<compile_context>
chip_gen: v7x
topology: tpu7x:2x2x1
jax: 0.10.0
libtpu: 0.0.40
codegen_flags: <defaults>
</compile_context>

<pallas_src>
import functools

import jax
import jax.numpy as jnp
from jax import lax
from jax.experimental import pallas as pl
from jax.experimental.pallas import tpu as pltpu


def _repconv_kernel(xm_ref, xu_ref, xd_ref, w_ref, b_ref, o_ref):
    """Fused (re-parameterized) 3x3 conv + bias + SiLU on one (1, TH, W, TN) tile.

    xm_ref: (1, TH, W, C1)   tile rows of the input (NHWC, bf16)
    xu_ref: (1, 1,  W, C1)   row just above the tile (garbage for the top tile)
    xd_ref: (1, 1,  W, C1)   row just below the tile (garbage for the bottom tile)
    w_ref : (3, 3*C1, TN)    folded weight, kw merged into the K axis (bf16)
    b_ref : (1, 1, TN)       folded bias (f32)
    o_ref : (1, TH, W, TN)   bf16 output tile
    """
    _, TH, W, C1 = xm_ref.shape
    TN = o_ref.shape[-1]
    h = pl.program_id(1)
    nh = pl.num_programs(1)

    # Assemble the (TH+2)-row band in bf16; zero the halo rows at the image
    # boundary (the halo BlockSpecs DMA a clamped real row there).
    mid = xm_ref[0]                                                  # (TH, W, C1)
    up = jnp.where(h > 0, xu_ref[0], jnp.zeros_like(xu_ref[0]))      # (1, W, C1)
    dn = jnp.where(h < nh - 1, xd_ref[0], jnp.zeros_like(xd_ref[0]))
    band = jnp.concatenate([up, mid, dn], axis=0)                    # (TH+2, W, C1) bf16

    # kw taps via XLU rolls along W (sublanes) + boundary masks -- no unaligned
    # sublane slices.  The rotate itself runs on a transient 32-bit view (the
    # always-supported sublane-rotate path) and is cast right back to bf16, so
    # the only f32 temporary is `band32`.
    # TODO(synk): use a native packed bf16 sublane roll once unconditionally
    # supported by Mosaic; it would remove the up/down casts.
    band32 = band.astype(jnp.float32)
    w_idx = lax.broadcasted_iota(jnp.int32, (1, W, 1), 1)
    left = jnp.where(w_idx > 0, pltpu.roll(band32, 1, axis=1), 0.0).astype(band.dtype)
    right = jnp.where(w_idx < W - 1, pltpu.roll(band32, W - 1, axis=1), 0.0).astype(band.dtype)

    # Fold kw into the contraction axis: (TH+2, W, 3*C1) bf16, matching w_ref[kh].
    # left/right die here; no wider copies are kept live.
    xcat = jnp.concatenate([left, band, right], axis=-1)

    # One large-M 2-D matmul per kh (M = TH*W, K = 3*C1), f32 MXU accumulation.
    def tap(kh):
        lhs = xcat[kh:kh + TH].reshape(TH * W, 3 * C1)
        return jnp.dot(lhs, w_ref[kh], preferred_element_type=jnp.float32)

    acc = tap(0)          # init from the first tap: no zeros+add pass
    acc = acc + tap(1)
    acc = acc + tap(2)

    # Epilogue on the flat lane-dense (TH*W, TN) slab: bias + SiLU in f32,
    # single bf16 store.
    y = acc + b_ref[0]
    y = y * jax.nn.sigmoid(y)
    o_ref[0] = y.astype(o_ref.dtype).reshape(TH, W, TN)


def _vmem_capacity_bytes():
    """Per-core VMEM of the current part; conservative v7x fallback (64 MiB)."""
    try:
        return int(pltpu.get_tpu_info().vmem_capacity_bytes)
    except Exception:
        return 64 * 1024 * 1024


def _pick_tn(C1, C2):
    """Output-channel tile.  Split C2 only when the double-buffered bf16 weight
    block is large; keeps VMEM free for a taller H tile and gives more parallel
    grid work (v7x, batch-1)."""
    if 2 * (9 * C1 * C2 * 2) <= 4 * 1024 * 1024:
        return C2
    for tn in (512, 384, 256, 128):
        if C2 % tn == 0:
            return tn
    return C2


def _pick_tile_h(H, W, C1, TN, max_th, vmem_bytes):
    """Largest H-tile (a divisor of H) whose full working set fits the budget.

    Accounts for the double-buffered pipeline tiles, the double-buffered folded
    weight/bias, AND the in-kernel temporaries (band/band32/left/right/xcat on
    the input side, acc/epilogue on the output side).
    """
    budget = int(vmem_bytes * 0.45)
    fixed = (2 * (9 * C1 * TN * 2)        # double-buffered folded weight (bf16)
             + 2 * 4 * TN                 # double-buffered bias (f32)
             + 2 * 4 * W * 2 * C1)        # double-buffered halo rows (bf16)
    # per H-row (x W): 2x bf16 in-buf + band(2)+band32(4)+left(2)+right(2)+xcat(6)
    #                  and 2x bf16 out-buf + acc(4) + epilogue(4)
    bytes_per_row = W * (20 * C1 + 12 * TN)
    cap = max(1, (budget - fixed) // max(bytes_per_row, 1))
    if max_th is not None:
        cap = min(cap, max_th)
    cap = int(max(1, min(cap, H)))
    for th in range(cap, 0, -1):
        if H % th == 0:
            return th
    # TODO(synk): ragged H (prime H) falls back to TH=1; masked partial tiles
    # would avoid this perf cliff.
    return 1


def _fold_repconv_params(w3_oihw, w1_oihw,
                         bn3_gamma, bn3_beta, bn3_mean, bn3_var,
                         bn1_gamma, bn1_beta, bn1_mean, bn1_var,
                         eps, compute_dtype):
    """RepConv re-parameterization (matches get_equivalent_kernel_bias, bn=False)."""
    C2, C1 = w3_oihw.shape[0], w3_oihw.shape[1]
    s3 = bn3_gamma / jnp.sqrt(bn3_var + eps)                 # conv1 (3x3) branch BN
    s1 = bn1_gamma / jnp.sqrt(bn1_var + eps)                 # conv2 (1x1) branch BN
    w3f = w3_oihw * s3[:, None, None, None]                  # fold BN scale into 3x3
    w1f = w1_oihw[:, :, 0, 0] * s1[:, None]                  # fold BN scale into 1x1
    w3f = w3f.at[:, :, 1, 1].add(w1f)                        # fold 1x1 into center tap
    bias = (bn3_beta - bn3_mean * s3) + (bn1_beta - bn1_mean * s1)
    # OIHW -> HWIO -> (3, 3*C1, C2): kw merged into the contraction K axis.
    w_k = jnp.transpose(w3f, (2, 3, 1, 0)).reshape(3, 3 * C1, C2).astype(compute_dtype)
    bias3 = bias.reshape(1, 1, C2).astype(jnp.float32)
    return w_k, bias3


def _repconv_nhwc_pallas(x_nhwc, w_k, bias3, max_th):
    N, H, W, C1 = x_nhwc.shape
    C2 = w_k.shape[-1]

    vmem_bytes = _vmem_capacity_bytes()
    tn = _pick_tn(C1, C2)
    th = _pick_tile_h(H, W, C1, tn, max_th, vmem_bytes)
    nh = H // th
    nc = C2 // tn

    return pl.pallas_call(
        _repconv_kernel,
        out_shape=jax.ShapeDtypeStruct((N, H, W, C2), x_nhwc.dtype),   # bf16 output
        grid=(N, nh, nc),
        in_specs=[
            # main tile rows
            pl.BlockSpec((1, th, W, C1), lambda n, h, j: (n, h, 0, 0)),
            # one-row halos (block size 1 along H => block index == row index);
            # at the image boundary a clamped real row is DMA'd and zero-masked
            # in-kernel (harmless tiny extra DMA).
            pl.BlockSpec((1, 1, W, C1),
                         lambda n, h, j: (n, jnp.maximum(h * th - 1, 0), 0, 0)),
            pl.BlockSpec((1, 1, W, C1),
                         lambda n, h, j: (n, jnp.minimum((h + 1) * th, H - 1), 0, 0)),
            # folded weight + bias, tiled along C2 when the weight is large
            pl.BlockSpec((3, 3 * C1, tn), lambda n, h, j: (0, 0, j)),
            pl.BlockSpec((1, 1, tn), lambda n, h, j: (0, 0, j)),
        ],
        out_specs=pl.BlockSpec((1, th, W, tn), lambda n, h, j: (n, h, 0, j)),
        compiler_params=pltpu.CompilerParams(
            dimension_semantics=("parallel", "parallel", "parallel"),
            vmem_limit_bytes=int(vmem_bytes * 0.65)),
    )(x_nhwc, x_nhwc, x_nhwc, w_k, bias3)


@functools.partial(jax.jit, static_argnames=("eps", "max_th", "compute_dtype"))
def repconv_forward_nhwc(x_nhwc, w3_oihw, w1_oihw,
                         bn3_gamma, bn3_beta, bn3_mean, bn3_var,
                         bn1_gamma, bn1_beta, bn1_mean, bn1_var,
                         eps=1e-5, max_th=None, compute_dtype=jnp.bfloat16):
    """NHWC-in / NHWC-out RepConv.forward (no layout transposes at all)."""
    w_k, bias3 = _fold_repconv_params(
        w3_oihw, w1_oihw, bn3_gamma, bn3_beta, bn3_mean, bn3_var,
        bn1_gamma, bn1_beta, bn1_mean, bn1_var, eps, compute_dtype)
    return _repconv_nhwc_pallas(x_nhwc.astype(compute_dtype), w_k, bias3, max_th)


@functools.partial(jax.jit, static_argnames=("eps", "max_th", "compute_dtype"))
def repconv_forward(x_nchw, w3_oihw, w1_oihw,
                    bn3_gamma, bn3_beta, bn3_mean, bn3_var,
                    bn1_gamma, bn1_beta, bn1_mean, bn1_var,
                    eps=1e-5, max_th=None, compute_dtype=jnp.bfloat16):
    """RepConv.forward (k=3, s=1, p=1, g=1, d=1, act=SiLU, bn=False, eval-mode BN).

    NCHW convenience wrapper (matches the PyTorch module layout); both layout
    transposes run on bf16 data.  Prefer repconv_forward_nhwc end-to-end.
    Output dtype is compute_dtype (bf16 by default).
    """
    # TODO(synk): stride>1 / groups>1 / dilation>1 and the optional identity-BN
    # branch (bn=True) are not implemented (module defaults: k=3,s=1,g=1,d=1,bn=False).
    x_nhwc = jnp.transpose(x_nchw.astype(compute_dtype), (0, 2, 3, 1))
    out_nhwc = repconv_forward_nhwc(
        x_nhwc, w3_oihw, w1_oihw,
        bn3_gamma, bn3_beta, bn3_mean, bn3_var,
        bn1_gamma, bn1_beta, bn1_mean, bn1_var,
        eps=eps, max_th=max_th, compute_dtype=compute_dtype)
    return jnp.transpose(out_nhwc, (0, 3, 1, 2))


def _reference(x, w3, w1, g3, b3, m3, v3, g1, b1, m1, v1, eps=1e-5):
    """Pure-JAX f32 reference mirroring RepConv.forward (per-branch eval-mode BN)."""
    dn3 = lax.conv_dimension_numbers(x.shape, w3.shape, ("NCHW", "OIHW", "NCHW"))
    dn1 = lax.conv_dimension_numbers(x.shape, w1.shape, ("NCHW", "OIHW", "NCHW"))
    y3 = lax.conv_general_dilated(x, w3, (1, 1), ((1, 1), (1, 1)), dimension_numbers=dn3)
    y1 = lax.conv_general_dilated(x, w1, (1, 1), ((0, 0), (0, 0)), dimension_numbers=dn1)

    def bn(y, g, b, m, v):
        s = g / jnp.sqrt(v + eps)
        return y * s.reshape(1, -1, 1, 1) + (b - m * s).reshape(1, -1, 1, 1)

    y = bn(y3, g3, b3, m3, v3) + bn(y1, g1, b1, m1, v1)
    return y * jax.nn.sigmoid(y)


if __name__ == "__main__":
    key = jax.random.PRNGKey(0)
    ks = jax.random.split(key, 11)

    N, C1, C2, H, W = 2, 4, 8, 16, 16

    x = jax.random.normal(ks[0], (N, C1, H, W), jnp.float32)
    w3 = jax.random.normal(ks[1], (C2, C1, 3, 3), jnp.float32) * 0.1
    w1 = jax.random.normal(ks[2], (C2, C1, 1, 1), jnp.float32) * 0.1
    g3 = 1.0 + 0.1 * jax.random.normal(ks[3], (C2,), jnp.float32)
    b3 = 0.1 * jax.random.normal(ks[4], (C2,), jnp.float32)
    m3 = 0.1 * jax.random.normal(ks[5], (C2,), jnp.float32)
    v3 = jnp.abs(jax.random.normal(ks[6], (C2,), jnp.float32)) + 0.5
    g1 = 1.0 + 0.1 * jax.random.normal(ks[7], (C2,), jnp.float32)
    b1 = 0.1 * jax.random.normal(ks[8], (C2,), jnp.float32)
    m1 = 0.1 * jax.random.normal(ks[9], (C2,), jnp.float32)
    v1 = jnp.abs(jax.random.normal(ks[10], (C2,), jnp.float32)) + 0.5

    # max_th=8 forces 2 H-tiles at this small size so both halo boundaries are exercised.
    out = repconv_forward(x, w3, w1, g3, b3, m3, v3, g1, b1, m1, v1, max_th=8)
    jax.block_until_ready(out)

    ref = _reference(x, w3, w1, g3, b3, m3, v3, g1, b1, m1, v1)
    assert out.shape == (N, C2, H, W)
    out_f32 = out.astype(jnp.float32)
    max_err = float(jnp.max(jnp.abs(out_f32 - ref)))
    # bf16 activations/weights/output with f32 accumulation vs f32 reference.
    assert jnp.allclose(out_f32, ref, rtol=3e-2, atol=3e-2), f"max|err|={max_err}"

    print("KERNEL_OK")
</pallas_src>

<mosaic_0001>
module attributes {stable_mosaic.version = 11 : i64} {
  func.func @_repconv_kernel(%arg0: i32, %arg1: i32, %arg2: i32, %arg3: memref<1x8x16x4xbf16, #tpu.memory_space<vmem>>, %arg4: memref<1x1x16x4xbf16, #tpu.memory_space<vmem>>, %arg5: memref<1x1x16x4xbf16, #tpu.memory_space<vmem>>, %arg6: memref<3x12x8xbf16, #tpu.memory_space<vmem>>, %arg7: memref<1x1x8xf32, #tpu.memory_space<vmem>>, %arg8: memref<1x8x16x8xbf16, #tpu.memory_space<vmem>>) attributes {dimension_semantics = [#tpu.dimension_semantics<parallel>, #tpu.dimension_semantics<parallel>, #tpu.dimension_semantics<parallel>], iteration_bounds = array<i64: 2, 2, 1>, scalar_prefetch = 0 : i64, scratch_operands = 0 : i64, tpu.core_type = #tpu.core_type<tc>, window_params = [{transform_indices = @transform_0, window_bounds = array<i64: 1, 8, 16, 4>}, {transform_indices = @transform_1, window_bounds = array<i64: 1, 1, 16, 4>}, {transform_indices = @transform_2, window_bounds = array<i64: 1, 1, 16, 4>}, {transform_indices = @transform_3, window_bounds = array<i64: 3, 12, 8>}, {transform_indices = @transform_4, window_bounds = array<i64: 1, 1, 8>}, {transform_indices = @transform_5, window_bounds = array<i64: 1, 8, 16, 8>}]} {
    %c0 = arith.constant 0 : index
    %c0_0 = arith.constant 0 : index
    %c0_1 = arith.constant 0 : index
    %c0_2 = arith.constant 0 : index
    %0 = vector.load %arg3[%c0, %c0_0, %c0_1, %c0_2] : memref<1x8x16x4xbf16, #tpu.memory_space<vmem>>, vector<1x8x16x4xbf16>
    %1 = vector.shape_cast %0 : vector<1x8x16x4xbf16> to vector<8x16x4xbf16>
    %c0_i32 = arith.constant 0 : i32
    %2 = arith.cmpi sgt, %arg1, %c0_i32 : i32
    %c0_3 = arith.constant 0 : index
    %c0_4 = arith.constant 0 : index
    %c0_5 = arith.constant 0 : index
    %c0_6 = arith.constant 0 : index
    %3 = vector.load %arg4[%c0_3, %c0_4, %c0_5, %c0_6] : memref<1x1x16x4xbf16, #tpu.memory_space<vmem>>, vector<1x1x16x4xbf16>
    %4 = vector.shape_cast %3 : vector<1x1x16x4xbf16> to vector<1x16x4xbf16>
    %cst = arith.constant 0.000000e+00 : bf16
    %5 = vector.broadcast %cst : bf16 to vector<1x16x4xbf16>
    %6 = arith.select %2, %4, %5 : vector<1x16x4xbf16>
    %c1_i32 = arith.constant 1 : i32
    %7 = arith.cmpi slt, %arg1, %c1_i32 : i32
    %c0_7 = arith.constant 0 : index
    %c0_8 = arith.constant 0 : index
    %c0_9 = arith.constant 0 : index
    %c0_10 = arith.constant 0 : index
    %8 = vector.load %arg5[%c0_7, %c0_8, %c0_9, %c0_10] : memref<1x1x16x4xbf16, #tpu.memory_space<vmem>>, vector<1x1x16x4xbf16>
    %9 = vector.shape_cast %8 : vector<1x1x16x4xbf16> to vector<1x16x4xbf16>
    %cst_11 = arith.constant 0.000000e+00 : bf16
    %10 = vector.broadcast %cst_11 : bf16 to vector<1x16x4xbf16>
    %11 = arith.select %7, %9, %10 : vector<1x16x4xbf16>
    %12 = tpu.concatenate %6, %1, %11 in 0 : vector<1x16x4xbf16>, vector<8x16x4xbf16>, vector<1x16x4xbf16> -> vector<10x16x4xbf16>
    %13 = arith.extf %12 : vector<10x16x4xbf16> to vector<10x16x4xf32>
    %14 = tpu.iota {dimensions = array<i32: 1>} : vector<1x16x1xi32>
    %c0_i32_12 = arith.constant 0 : i32
    %15 = vector.broadcast %c0_i32_12 : i32 to vector<1x16x1xi32>
    %16 = arith.cmpi sgt, %14, %15 : vector<1x16x1xi32>
    %c1_i32_13 = arith.constant 1 : i32
    %17 = tpu.dynamic_rotate %13 by %c1_i32_13 dim 1 : vector<10x16x4xf32>, i32 -> vector<10x16x4xf32>
    %cst_14 = arith.constant 0.000000e+00 : f32
    %18 = vector.shape_cast %16 : vector<1x16x1xi1> to vector<1x16x1xi1>
    %19 = vector.broadcast %18 : vector<1x16x1xi1> to vector<10x16x4xi1>
    %20 = vector.broadcast %cst_14 : f32 to vector<10x16x4xf32>
    %21 = arith.select %19, %17, %20 : vector<10x16x4xi1>, vector<10x16x4xf32>
    %22 = arith.truncf %21 : vector<10x16x4xf32> to vector<10x16x4xbf16>
    %c15_i32 = arith.constant 15 : i32
    %23 = vector.broadcast %c15_i32 : i32 to vector<1x16x1xi32>
    %24 = arith.cmpi slt, %14, %23 : vector<1x16x1xi32>
    %c15_i32_15 = arith.constant 15 : i32
    %25 = tpu.dynamic_rotate %13 by %c15_i32_15 dim 1 : vector<10x16x4xf32>, i32 -> vector<10x16x4xf32>
    %cst_16 = arith.constant 0.000000e+00 : f32
    %26 = vector.shape_cast %24 : vector<1x16x1xi1> to vector<1x16x1xi1>
    %27 = vector.broadcast %26 : vector<1x16x1xi1> to vector<10x16x4xi1>
    %28 = vector.broadcast %cst_16 : f32 to vector<10x16x4xf32>
    %29 = arith.select %27, %25, %28 : vector<10x16x4xi1>, vector<10x16x4xf32>
    %30 = arith.truncf %29 : vector<10x16x4xf32> to vector<10x16x4xbf16>
    %31 = tpu.concatenate %22, %12, %30 in 2 : vector<10x16x4xbf16>, vector<10x16x4xbf16>, vector<10x16x4xbf16> -> vector<10x16x12xbf16>
    %32 = vector.extract_strided_slice %31 {offsets = [0, 0, 0], sizes = [8, 16, 12], strides = [1, 1, 1]} : vector<10x16x12xbf16> to vector<8x16x12xbf16>
    %33 = vector.shape_cast %32 : vector<8x16x12xbf16> to vector<128x12xbf16>
    %c0_17 = arith.constant 0 : index
    %c0_18 = arith.constant 0 : index
    %c0_19 = arith.constant 0 : index
    %34 = vector.load %arg6[%c0_17, %c0_18, %c0_19] : memref<3x12x8xbf16, #tpu.memory_space<vmem>>, vector<1x12x8xbf16>
    %35 = vector.shape_cast %34 : vector<1x12x8xbf16> to vector<12x8xbf16>
    %cst_20 = arith.constant dense<0.000000e+00> : vector<128x8xf32>
    %36 = tpu.matmul %33, %35, %cst_20 {dimension_numbers = #tpu.dot_dimension_numbers<[1], [0], [0], [1], [0, 0, 1, 1], [], []>} : vector<128x12xbf16>, vector<12x8xbf16>, vector<128x8xf32> -> vector<128x8xf32>
    %37 = vector.extract_strided_slice %31 {offsets = [1, 0, 0], sizes = [8, 16, 12], strides = [1, 1, 1]} : vector<10x16x12xbf16> to vector<8x16x12xbf16>
    %38 = vector.shape_cast %37 : vector<8x16x12xbf16> to vector<128x12xbf16>
    %c1 = arith.constant 1 : index
    %c0_21 = arith.constant 0 : index
    %c0_22 = arith.constant 0 : index
    %39 = vector.load %arg6[%c1, %c0_21, %c0_22] : memref<3x12x8xbf16, #tpu.memory_space<vmem>>, vector<1x12x8xbf16>
    %40 = vector.shape_cast %39 : vector<1x12x8xbf16> to vector<12x8xbf16>
    %cst_23 = arith.constant dense<0.000000e+00> : vector<128x8xf32>
    %41 = tpu.matmul %38, %40, %cst_23 {dimension_numbers = #tpu.dot_dimension_numbers<[1], [0], [0], [1], [0, 0, 1, 1], [], []>} : vector<128x12xbf16>, vector<12x8xbf16>, vector<128x8xf32> -> vector<128x8xf32>
    %42 = arith.addf %36, %41 : vector<128x8xf32>
    %43 = vector.extract_strided_slice %31 {offsets = [2, 0, 0], sizes = [8, 16, 12], strides = [1, 1, 1]} : vector<10x16x12xbf16> to vector<8x16x12xbf16>
    %44 = vector.shape_cast %43 : vector<8x16x12xbf16> to vector<128x12xbf16>
    %c2 = arith.constant 2 : index
    %c0_24 = arith.constant 0 : index
    %c0_25 = arith.constant 0 : index
    %45 = vector.load %arg6[%c2, %c0_24, %c0_25] : memref<3x12x8xbf16, #tpu.memory_space<vmem>>, vector<1x12x8xbf16>
    %46 = vector.shape_cast %45 : vector<1x12x8xbf16> to vector<12x8xbf16>
    %cst_26 = arith.constant dense<0.000000e+00> : vector<128x8xf32>
    %47 = tpu.matmul %44, %46, %cst_26 {dimension_numbers = #tpu.dot_dimension_numbers<[1], [0], [0], [1], [0, 0, 1, 1], [], []>} : vector<128x12xbf16>, vector<12x8xbf16>, vector<128x8xf32> -> vector<128x8xf32>
    %48 = arith.addf %42, %47 : vector<128x8xf32>
    %c0_27 = arith.constant 0 : index
    %c0_28 = arith.constant 0 : index
    %c0_29 = arith.constant 0 : index
    %49 = vector.load %arg7[%c0_27, %c0_28, %c0_29] : memref<1x1x8xf32, #tpu.memory_space<vmem>>, vector<1x1x8xf32>
    %50 = vector.shape_cast %49 : vector<1x1x8xf32> to vector<1x8xf32>
    %51 = vector.broadcast %50 : vector<1x8xf32> to vector<128x8xf32>
    %52 = arith.addf %48, %51 : vector<128x8xf32>
    %53 = arith.negf %52 : vector<128x8xf32>
    %54 = math.exp %53 : vector<128x8xf32>
    %cst_30 = arith.constant 1.000000e+00 : f32
    %55 = vector.broadcast %cst_30 : f32 to vector<128x8xf32>
    %56 = arith.addf %55, %54 : vector<128x8xf32>
    %57 = arith.divf %55, %56 : vector<128x8xf32>
    %58 = arith.mulf %52, %57 : vector<128x8xf32>
    %59 = arith.truncf %58 : vector<128x8xf32> to vector<128x8xbf16>
    %60 = vector.shape_cast %59 : vector<128x8xbf16> to vector<8x16x8xbf16>
    %c0_31 = arith.constant 0 : index
    %c0_32 = arith.constant 0 : index
    %c0_33 = arith.constant 0 : index
    %c0_34 = arith.constant 0 : index
    %61 = vector.load %arg8[%c0_31, %c0_32, %c0_33, %c0_34] : memref<1x8x16x8xbf16, #tpu.memory_space<vmem>>, vector<1x8x16x8xbf16>
    %62 = vector.shape_cast %61 : vector<1x8x16x8xbf16> to vector<8x16x8xbf16>
    %63 = vector.shape_cast %60 : vector<8x16x8xbf16> to vector<1x8x16x8xbf16>
    tpu.vector_store %arg8[%c0_31, %c0_32, %c0_33, %c0_34], %63 {strides = array<i32>} : memref<1x8x16x8xbf16, #tpu.memory_space<vmem>>, vector<1x8x16x8xbf16>,
    return
  }
  func.func @transform_0(%arg0: i32, %arg1: i32, %arg2: i32) -> (i32, i32, i32, i32) {
    %c0_i32 = arith.constant 0 : i32
    %c0_i32_0 = arith.constant 0 : i32
    %c0_i32_1 = arith.constant 0 : i32
    return %arg0, %arg1, %c0_i32, %c0_i32_0 : i32, i32, i32, i32
  }
  func.func @transform_1(%arg0: i32, %arg1: i32, %arg2: i32) -> (i32, i32, i32, i32) {
    %c8_i32 = arith.constant 8 : i32
    %0 = arith.muli %arg1, %c8_i32 : i32
    %c1_i32 = arith.constant 1 : i32
    %1 = arith.subi %0, %c1_i32 : i32
    %c0_i32 = arith.constant 0 : i32
    %2 = arith.maxsi %1, %c0_i32 : i32
    %c0_i32_0 = arith.constant 0 : i32
    %c0_i32_1 = arith.constant 0 : i32
    %c0_i32_2 = arith.constant 0 : i32
    return %arg0, %2, %c0_i32_0, %c0_i32_1 : i32, i32, i32, i32
  }
  func.func @transform_2(%arg0: i32, %arg1: i32, %arg2: i32) -> (i32, i32, i32, i32) {
    %c1_i32 = arith.constant 1 : i32
    %0 = arith.addi %arg1, %c1_i32 : i32
    %c8_i32 = arith.constant 8 : i32
    %1 = arith.muli %0, %c8_i32 : i32
    %c15_i32 = arith.constant 15 : i32
    %2 = arith.minsi %1, %c15_i32 : i32
    %c0_i32 = arith.constant 0 : i32
    %c0_i32_0 = arith.constant 0 : i32
    %c0_i32_1 = arith.constant 0 : i32
    return %arg0, %2, %c0_i32, %c0_i32_0 : i32, i32, i32, i32
  }
  func.func @transform_3(%arg0: i32, %arg1: i32, %arg2: i32) -> (i32, i32, i32) {
    %c0_i32 = arith.constant 0 : i32
    %c0_i32_0 = arith.constant 0 : i32
    %c0_i32_1 = arith.constant 0 : i32
    return %c0_i32, %c0_i32_0, %arg2 : i32, i32, i32
  }
  func.func @transform_4(%arg0: i32, %arg1: i32, %arg2: i32) -> (i32, i32, i32) {
    %c0_i32 = arith.constant 0 : i32
    %c0_i32_0 = arith.constant 0 : i32
    %c0_i32_1 = arith.constant 0 : i32
    return %c0_i32, %c0_i32_0, %arg2 : i32, i32, i32
  }
  func.func @transform_5(%arg0: i32, %arg1: i32, %arg2: i32) -> (i32, i32, i32, i32) {
    %c0_i32 = arith.constant 0 : i32
    %c0_i32_0 = arith.constant 0 : i32
    return %arg0, %arg1, %c0_i32, %arg2 : i32, i32, i32, i32
  }
}

</mosaic_0001>

<llo_original>
// kernel: repconv_forward_nhwc.1
$region0: #{repconv_forward_nhwc.1}
  #allocation0 [shape = 'u32[]', space=smem, size = 0x4, offset = 0x4, fixed_abs, tag = 'smem constant byte address 0x4 - core index']
  #allocation1 [shape = 'u32[144,128]{1,0:T(1,128)}', space=vmem, size = 0x12000, scoped, tag = 'internal scratch']
  %s0 = inlined_call_operand.vmem [shape: bf16[2,16,16,4], index: 0, kind: input, shape index: {}, may-alias: {0,1,2}]
  %s1 = inlined_call_operand.vmem [shape: bf16[2,16,16,4], index: 1, kind: input, shape index: {}, may-alias: {0,1,2}]
  %s2 = inlined_call_operand.vmem [shape: bf16[2,16,16,4], index: 2, kind: input, shape index: {}, may-alias: {0,1,2}]
  %s3 = inlined_call_operand.vmem [shape: bf16[3,12,8], index: 3, kind: input, shape index: {}]
  %s4 = inlined_call_operand.vmem [shape: f32[1,1,8], index: 4, kind: input, shape index: {}]
  %s5 = inlined_call_operand.vmem [shape: bf16[2,16,16,8], index: 5, kind: output, shape index: {}]
  %s6 = sld [smem:[#allocation0]]
  $region53: #{repconv_forward_nhwc.1} parent=0
    _
  %s8 = ssub.s32 1, %s6
  %s9 = scalar_select 0, %s8, %s6
  loop: start=0, step=1, limit=6
  $region2: #{repconv_forward_nhwc.1} parent=0 // loop_pre_header
    _
  $region3: #{repconv_forward_nhwc.1} parent=0 // loop_header
    %s11 = sphi 0, %s15
    %p12 = scmp.ge.s32.totalorder %s11, 6
    %s18 = sphi 0, %s37
    %s19 = sphi 0, %s33
    %s20 = sphi 0, %s29
    %s21 = sphi 0, %s18
    %s22 = sphi 0, %s19
    %s23 = sphi 0, %s20
    %s24 = sphi 0, %s21
    %s25 = sphi 0, %s22
    %s26 = sphi 0, %s23
    %s42 = sphi 0, %s44
    %s45 = sphi 0, %s42
    %s46 = sphi 0, %s45
    %s62 = sphi 0, %s46
    %s78 = sphi 0, %s80
    %s81 = sphi 0, %s78
    %s82 = sphi 0, %s81
    %s98 = sphi 0, %s82
    %s114 = sphi 0, %s116
    %s117 = sphi 0, %s114
    %s118 = sphi 0, %s117
    %s134 = sphi 0, %s118
    %s140 = sphi 0, %s142
    %s143 = sphi 0, %s140
    %s144 = sphi 0, %s143
    %s160 = sphi 0, %s144
    %s166 = sphi 0, %s168
    %s169 = sphi 0, %s166
    %s170 = sphi 0, %s169
    %s186 = sphi 0, %s170
    %s196 = sphi 0, %s198
    %s199 = sphi 0, %s196
    %s200 = sphi 0, %s199
    %s216 = sphi 0, %s200
  $region4: #{repconv_forward_nhwc.1} parent=0 // loop_header_branch
    %14 = sbr.rel (%p12) target = $region8
  $region5: #{repconv_forward_nhwc.1} parent=0 // loop_body
    %s16 = ssub.s32 %s11, 1
    %s17 = ssub.s32 %s11, 2
    %s27 = sadd.s32 1, %s20
    %p28 = scmp.ge.s32.totalorder %s27, 1
    %s29 = scalar_select %p28, 0, %s27
    %s30 = sadd.s32 1, %s19
    %s31 = scalar_select %p28, %s30, %s19
    %p32 = scmp.ge.s32.totalorder %s31, 2
    %s33 = scalar_select %p32, 0, %s31
    %s34 = sadd.s32 1, %s18
    %s35 = scalar_select %p32, %s34, %s18
    %p36 = scmp.ge.s32.totalorder %s35, 2
    %s37 = scalar_select %p36, 0, %s35
    %s38 = ssub.s32 %s18, %s37
    %s39 = ssub.s32 %s19, %s33
    %s40 = sor.u32 %s38, %s39
    %p41 = scmp.eq.s32.totalorder %s40, 0
    %s43 = sadd.s32 %s42, 1
    %s44 = scalar_select %p41, %s42, %s43
    %p47 = pneg %p41
    %p48 = scmp.eq.s32.totalorder %s11, 3
    %p49 = por %p47, %p48
    %p50 = scmp.ne.s32.totalorder %s42, %s45
    %p51 = scmp.eq.s32.totalorder %s11, 0
    %p52 = por %p50, %p51
    %p53 = scmp.ne.s32.totalorder %s42, %s45
    %p54 = scmp.eq.s32.totalorder %s16, 3
    %p55 = por %p53, %p54
    %p56 = scmp.ne.s32.totalorder %s45, %s46
    %p57 = scmp.eq.s32.totalorder %s16, 0
    %p58 = por %p56, %p57
    %p59 = scmp.ne.s32.totalorder %s45, %s46
    %p60 = scmp.eq.s32.totalorder %s17, 3
    %p61 = por %p59, %p60
    %p63 = scmp.ne.s32.totalorder %s46, %s62
    %p64 = scmp.eq.s32.totalorder %s17, 0
    %p65 = por %p63, %p64
    %s66 = smul.u32 %s19, 8
    %s67 = ssub.s32 %s66, 1
    %p68 = scmp.gt.s32.totalorder %s67, 0
    %s69 = scalar_select %p68, %s67, 0
    %s70 = smul.u32 %s33, 8
    %s71 = ssub.s32 %s70, 1
    %p72 = scmp.gt.s32.totalorder %s71, 0
    %s73 = scalar_select %p72, %s71, 0
    %s74 = ssub.s32 %s18, %s37
    %s75 = ssub.s32 %s69, %s73
    %s76 = sor.u32 %s74, %s75
    %p77 = scmp.eq.s32.totalorder %s76, 0
    %s79 = sadd.s32 %s78, 1
    %s80 = scalar_select %p77, %s78, %s79
    %p83 = pneg %p77
    %p84 = scmp.eq.s32.totalorder %s11, 3
    %p85 = por %p83, %p84
    %p86 = scmp.ne.s32.totalorder %s78, %s81
    %p87 = scmp.eq.s32.totalorder %s11, 0
    %p88 = por %p86, %p87
    %p89 = scmp.ne.s32.totalorder %s78, %s81
    %p90 = scmp.eq.s32.totalorder %s16, 3
    %p91 = por %p89, %p90
    %p92 = scmp.ne.s32.totalorder %s81, %s82
    %p93 = scmp.eq.s32.totalorder %s16, 0
    %p94 = por %p92, %p93
    %p95 = scmp.ne.s32.totalorder %s81, %s82
    %p96 = scmp.eq.s32.totalorder %s17, 3
    %p97 = por %p95, %p96
    %p99 = scmp.ne.s32.totalorder %s82, %s98
    %p100 = scmp.eq.s32.totalorder %s17, 0
    %p101 = por %p99, %p100
    %s102 = sadd.s32 %s19, 1
    %s103 = smul.u32 %s102, 8
    %p104 = scmp.lt.s32.totalorder %s103, 15
    %s105 = scalar_select %p104, %s103, 15
    %s106 = sadd.s32 %s33, 1
    %s107 = smul.u32 %s106, 8
    %p108 = scmp.lt.s32.totalorder %s107, 15
    %s109 = scalar_select %p108, %s107, 15
    %s110 = ssub.s32 %s18, %s37
    %s111 = ssub.s32 %s105, %s109
    %s112 = sor.u32 %s110, %s111
    %p113 = scmp.eq.s32.totalorder %s112, 0
    %s115 = sadd.s32 %s114, 1
    %s116 = scalar_select %p113, %s114, %s115
    %p119 = pneg %p113
    %p120 = scmp.eq.s32.totalorder %s11, 3
    %p121 = por %p119, %p120
    %p122 = scmp.ne.s32.totalorder %s114, %s117
    %p123 = scmp.eq.s32.totalorder %s11, 0
    %p124 = por %p122, %p123
    %p125 = scmp.ne.s32.totalorder %s114, %s117
    %p126 = scmp.eq.s32.totalorder %s16, 3
    %p127 = por %p125, %p126
    %p128 = scmp.ne.s32.totalorder %s117, %s118
    %p129 = scmp.eq.s32.totalorder %s16, 0
    %p130 = por %p128, %p129
    %p131 = scmp.ne.s32.totalorder %s117, %s118
    %p132 = scmp.eq.s32.totalorder %s17, 3
    %p133 = por %p131, %p132
    %p135 = scmp.ne.s32.totalorder %s118, %s134
    %p136 = scmp.eq.s32.totalorder %s17, 0
    %p137 = por %p135, %p136
    %s138 = ssub.s32 %s20, %s29
    %p139 = scmp.eq.s32.totalorder %s138, 0
    %s141 = sadd.s32 %s140, 1
    %s142 = scalar_select %p139, %s140, %s141
    %p145 = pneg %p139
    %p146 = scmp.eq.s32.totalorder %s11, 3
    %p147 = por %p145, %p146
    %p148 = scmp.ne.s32.totalorder %s140, %s143
    %p149 = scmp.eq.s32.totalorder %s11, 0
    %p150 = por %p148, %p149
    %p151 = scmp.ne.s32.totalorder %s140, %s143
    %p152 = scmp.eq.s32.totalorder %s16, 3
    %p153 = por %p151, %p152
    %p154 = scmp.ne.s32.totalorder %s143, %s144
    %p155 = scmp.eq.s32.totalorder %s16, 0
    %p156 = por %p154, %p155
    %p157 = scmp.ne.s32.totalorder %s143, %s144
    %p158 = scmp.eq.s32.totalorder %s17, 3
    %p159 = por %p157, %p158
    %p161 = scmp.ne.s32.totalorder %s144, %s160
    %p162 = scmp.eq.s32.totalorder %s17, 0
    %p163 = por %p161, %p162
    %s164 = ssub.s32 %s20, %s29
    %p165 = scmp.eq.s32.totalorder %s164, 0
    %s167 = sadd.s32 %s166, 1
    %s168 = scalar_select %p165, %s166, %s167
    %p171 = pneg %p165
    %p172 = scmp.eq.s32.totalorder %s11, 3
    %p173 = por %p171, %p172
    %p174 = scmp.ne.s32.totalorder %s166, %s169
    %p175 = scmp.eq.s32.totalorder %s11, 0
    %p176 = por %p174, %p175
    %p177 = scmp.ne.s32.totalorder %s166, %s169
    %p178 = scmp.eq.s32.totalorder %s16, 3
    %p179 = por %p177, %p178
    %p180 = scmp.ne.s32.totalorder %s169, %s170
    %p181 = scmp.eq.s32.totalorder %s16, 0
    %p182 = por %p180, %p181
    %p183 = scmp.ne.s32.totalorder %s169, %s170
    %p184 = scmp.eq.s32.totalorder %s17, 3
    %p185 = por %p183, %p184
    %p187 = scmp.ne.s32.totalorder %s170, %s186
    %p188 = scmp.eq.s32.totalorder %s17, 0
    %p189 = por %p187, %p188
    %s190 = ssub.s32 %s18, %s37
    %s191 = ssub.s32 %s19, %s33
    %s192 = sor.u32 %s190, %s191
    %s193 = ssub.s32 %s20, %s29
    %s194 = sor.u32 %s192, %s193
    %p195 = scmp.eq.s32.totalorder %s194, 0
    %s197 = sadd.s32 %s196, 1
    %s198 = scalar_select %p195, %s196, %s197
    %p201 = pneg %p195
    %p202 = scmp.eq.s32.totalorder %s11, 3
    %p203 = por %p201, %p202
    %p204 = scmp.ne.s32.totalorder %s196, %s199
    %p205 = scmp.eq.s32.totalorder %s11, 0
    %p206 = por %p204, %p205
    %p207 = scmp.ne.s32.totalorder %s196, %s199
    %p208 = scmp.eq.s32.totalorder %s16, 3
    %p209 = por %p207, %p208
    %p210 = scmp.ne.s32.totalorder %s199, %s200
    %p211 = scmp.eq.s32.totalorder %s16, 0
    %p212 = por %p210, %p211
    %p213 = scmp.ne.s32.totalorder %s199, %s200
    %p214 = scmp.eq.s32.totalorder %s17, 3
    %p215 = por %p213, %p214
    %p217 = scmp.ne.s32.totalorder %s200, %s216
    %p218 = scmp.eq.s32.totalorder %s17, 0
    %p219 = por %p217, %p218
    %p220 = scmp.le.s32.totalorder 1, %s11
    %p221 = scmp.lt.s32.totalorder %s11, 5
    %p222 = pnand %p220, %p221
    %p223 = pneg %p222
    // Predicated region
    $region9: #{repconv_forward_nhwc.1} parent=5 // pred_check
      _
    $region10: #{repconv_forward_nhwc.1} parent=5 // pred_check_branch
      %225 = sbr.rel (%p222) target = $region12
    $region11: #{repconv_forward_nhwc.1} parent=5 // pred_region
      %s226 = ssub.s32 %s11, 1
      // Predicated region
      $region13: #{repconv_forward_nhwc.1} parent=11 // pred_check
        %p227 = pneg %p156
      $region14: #{repconv_forward_nhwc.1} parent=11 // pred_check_branch
        %229 = sbr.rel (%p227) target = $region16
      $region15: #{repconv_forward_nhwc.1} parent=11 // pred_region
        %p230 = scmp.lt.s32.totalorder %s23, 0
        %s231 = scalar_select %p230, %s23, 0
        %s232 = smul.addr %s231, 4
        %s233 = scalar_lea.vmem %s3, %s232
      $region16: #{repconv_forward_nhwc.1} parent=11 // pred_fallthru
        _
      // Predicated region
      $region17: #{repconv_forward_nhwc.1} parent=11 // pred_check
        %p234 = pneg %p182
      $region18: #{repconv_forward_nhwc.1} parent=11 // pred_check_branch
        %236 = sbr.rel (%p234) target = $region20
      $region19: #{repconv_forward_nhwc.1} parent=11 // pred_region
        %p237 = scmp.lt.s32.totalorder %s23, 0
        %s238 = scalar_select %p237, %s23, 0
        %s239 = scalar_lea.vmem %s4, %s238
      $region20: #{repconv_forward_nhwc.1} parent=11 // pred_fallthru
        _
    $region12: #{repconv_forward_nhwc.1} parent=5 // pred_fallthru
      _
    %p240 = scmp.lt.s32.totalorder %s11, 4
    // Predicated region
    $region21: #{repconv_forward_nhwc.1} parent=5 // pred_check
      %p241 = pneg %p240
    $region22: #{repconv_forward_nhwc.1} parent=5 // pred_check_branch
      %243 = sbr.rel (%p241) target = $region24
    $region23: #{repconv_forward_nhwc.1} parent=5 // pred_region
      // Predicated region
      $region25: #{repconv_forward_nhwc.1} parent=23 // pred_check
        %p244 = pneg %p52
      $region26: #{repconv_forward_nhwc.1} parent=23 // pred_check_branch
        %246 = sbr.rel (%p244) target = $region28
      $region27: #{repconv_forward_nhwc.1} parent=23 // pred_region
        %s247 = smul.u32 8, %s19
        %p248 = scmp.lt.s32.totalorder %s18, 1
        %s249 = scalar_select %p248, %s18, 1
        %p250 = scmp.lt.s32.totalorder %s247, 15
        %s251 = scalar_select %p250, %s247, 15
        %s252 = smul.addr %s251, 2
        %s253 = smul.addr %s249, 32
        %s254 = sadd.s32 %s252, %s253
        %s255 = smul.addr %s254, 4
        %s256 = scalar_lea.vmem %s0, %s255
        %s257 = smul.u32 8, %s19
      $region28: #{repconv_forward_nhwc.1} parent=23 // pred_fallthru
        _
      // Predicated region
      $region29: #{repconv_forward_nhwc.1} parent=23 // pred_check
        %p258 = pneg %p88
      $region30: #{repconv_forward_nhwc.1} parent=23 // pred_check_branch
        %260 = sbr.rel (%p258) target = $region32
      $region31: #{repconv_forward_nhwc.1} parent=23 // pred_region
        %s261 = smul.u32 %s19, 8
        %s262 = ssub.s32 %s261, 1
        %p263 = scmp.gt.s32.totalorder %s262, 0
        %s264 = scalar_select %p263, %s262, 0
        %p265 = scmp.lt.s32.totalorder %s18, 1
        %s266 = scalar_select %p265, %s18, 1
        %p267 = scmp.lt.s32.totalorder %s264, 15
        %s268 = scalar_select %p267, %s264, 15
        %s269 = smul.addr %s268, 2
        %s270 = smul.addr %s266, 32
        %s271 = sadd.s32 %s269, %s270
        %s272 = smul.addr %s271, 4
        %s273 = scalar_lea.vmem %s1, %s272
        %s274 = smul.u32 %s19, 8
        %s275 = ssub.s32 %s274, 1
        %p276 = scmp.gt.s32.totalorder %s275, 0
        %s277 = scalar_select %p276, %s275, 0
      $region32: #{repconv_forward_nhwc.1} parent=23 // pred_fallthru
        _
      // Predicated region
      $region33: #{repconv_forward_nhwc.1} parent=23 // pred_check
        %p278 = pneg %p124
      $region34: #{repconv_forward_nhwc.1} parent=23 // pred_check_branch
        %280 = sbr.rel (%p278) target = $region36
      $region35: #{repconv_forward_nhwc.1} parent=23 // pred_region
        %s281 = sadd.s32 %s19, 1
        %s282 = smul.u32 %s281, 8
        %p283 = scmp.lt.s32.totalorder %s282, 15
        %s284 = scalar_select %p283, %s282, 15
        %p285 = scmp.lt.s32.totalorder %s18, 1
        %s286 = scalar_select %p285, %s18, 1
        %p287 = scmp.lt.s32.totalorder %s284, 15
        %s288 = scalar_select %p287, %s284, 15
        %s289 = smul.addr %s288, 2
        %s290 = smul.addr %s286, 32
        %s291 = sadd.s32 %s289, %s290
        %s292 = smul.addr %s291, 4
        %s293 = scalar_lea.vmem %s2, %s292
        %s294 = sadd.s32 %s19, 1
        %s295 = smul.u32 %s294, 8
        %p296 = scmp.lt.s32.totalorder %s295, 15
        %s297 = scalar_select %p296, %s295, 15
      $region36: #{repconv_forward_nhwc.1} parent=23 // pred_fallthru
        _
    $region24: #{repconv_forward_nhwc.1} parent=5 // pred_fallthru
      _
    %p298 = scmp.le.s32.totalorder 1, %s11
    %p299 = scmp.lt.s32.totalorder %s11, 5
    %p300 = pnand %p298, %p299
    %p301 = pneg %p300
    // Predicated region
    $region37: #{repconv_forward_nhwc.1} parent=5 // pred_check
      _
    $region38: #{repconv_forward_nhwc.1} parent=5 // pred_check_branch
      %303 = sbr.rel (%p300) target = $region40
    $region39: #{repconv_forward_nhwc.1} parent=5 // pred_region
      %s304 = ssub.s32 %s11, 1
      %s305 = smul.u32 8, %s22
      %p306 = scmp.lt.s32.totalorder %s21, 1
      %s307 = scalar_select %p306, %s21, 1
      %p308 = scmp.lt.s32.totalorder %s305, 15
      %s309 = scalar_select %p308, %s305, 15
      %s310 = smul.addr %s309, 2
      %s311 = smul.addr %s307, 32
      %s312 = sadd.s32 %s310, %s311
      %s313 = smul.addr %s312, 4
      %s314 = scalar_lea.vmem %s0, %s313
      %p315 = pneg %p58
      %p316 = pneg %p55
      %s317 = smul.u32 %s22, 8
      %s318 = ssub.s32 %s317, 1
      %p319 = scmp.gt.s32.totalorder %s318, 0
      %s320 = scalar_select %p319, %s318, 0
      %p321 = scmp.lt.s32.totalorder %s21, 1
      %s322 = scalar_select %p321, %s21, 1
      %p323 = scmp.lt.s32.totalorder %s320, 15
      %s324 = scalar_select %p323, %s320, 15
      %s325 = smul.addr %s324, 2
      %s326 = smul.addr %s322, 32
      %s327 = sadd.s32 %s325, %s326
      %s328 = smul.addr %s327, 4
      %s329 = scalar_lea.vmem %s1, %s328
      %p330 = pneg %p94
      %p331 = pneg %p91
      %s332 = sadd.s32 %s22, 1
      %s333 = smul.u32 %s332, 8
      %p334 = scmp.lt.s32.totalorder %s333, 15
      %s335 = scalar_select %p334, %s333, 15
      %p336 = scmp.lt.s32.totalorder %s21, 1
      %s337 = scalar_select %p336, %s21, 1
      %p338 = scmp.lt.s32.totalorder %s335, 15
      %s339 = scalar_select %p338, %s335, 15
      %s340 = smul.addr %s339, 2
      %s341 = smul.addr %s337, 32
      %s342 = sadd.s32 %s340, %s341
      %s343 = smul.addr %s342, 4
      %s344 = scalar_lea.vmem %s2, %s343
      %p345 = pneg %p130
      %p346 = pneg %p127
      %p347 = scmp.lt.s32.totalorder %s23, 0
      %s348 = scalar_select %p347, %s23, 0
      %s349 = smul.addr %s348, 4
      %s350 = scalar_lea.vmem %s3, %s349
      %p351 = pneg %p156
      %p352 = pneg %p153
      %p353 = scmp.lt.s32.totalorder %s23, 0
      %s354 = scalar_select %p353, %s23, 0
      %s355 = scalar_lea.vmem %s4, %s354
      %p356 = pneg %p182
      %p357 = pneg %p179
      %p358 = pneg %p212
      %p359 = pneg %p209
      %s360 = smul.u32 8, %s22
      %p361 = scmp.lt.s32.totalorder %s21, 1
      %s362 = scalar_select %p361, %s21, 1
      %p363 = scmp.lt.s32.totalorder %s360, 15
      %s364 = scalar_select %p363, %s360, 15
      %p365 = scmp.lt.s32.totalorder %s23, 0
      %s366 = scalar_select %p365, %s23, 0
      %s367 = smul.addr %s364, 2
      %s368 = sadd.s32 %s366, %s367
      %s369 = smul.addr %s362, 32
      %s370 = sadd.s32 %s368, %s369
      %s371 = smul.addr %s370, 4
      %s372 = scalar_lea.vmem %s5, %s371
      %s373 = smul.u32 8, %s22
      %p374 = scmp.lt.s32.totalorder %s21, 1
      %s375 = scalar_select %p374, %s21, 1
      %p376 = scmp.lt.s32.totalorder %s373, 15
      %s377 = scalar_select %p376, %s373, 15
      %s378 = smul.addr %s377, 2
      %s379 = smul.addr %s375, 32
      %s380 = sadd.s32 %s378, %s379
      %s381 = smul.addr %s380, 4
      %s382 = scalar_lea.vmem %s0, %s381
      %s383 = smul.u32 8, %s22
      %s384 = smul.u32 %s22, 8
      %s385 = ssub.s32 %s384, 1
      %p386 = scmp.gt.s32.totalorder %s385, 0
      %s387 = scalar_select %p386, %s385, 0
      %p388 = scmp.lt.s32.totalorder %s21, 1
      %s389 = scalar_select %p388, %s21, 1
      %p390 = scmp.lt.s32.totalorder %s387, 15
      %s391 = scalar_select %p390, %s387, 15
      %s392 = smul.addr %s391, 2
      %s393 = smul.addr %s389, 32
      %s394 = sadd.s32 %s392, %s393
      %s395 = smul.addr %s394, 4
      %s396 = scalar_lea.vmem %s1, %s395
      %s397 = smul.u32 %s22, 8
      %s398 = ssub.s32 %s397, 1
      %p399 = scmp.gt.s32.totalorder %s398, 0
      %s400 = scalar_select %p399, %s398, 0
      %s401 = sadd.s32 %s22, 1
      %s402 = smul.u32 %s401, 8
      %p403 = scmp.lt.s32.totalorder %s402, 15
      %s404 = scalar_select %p403, %s402, 15
      %p405 = scmp.lt.s32.totalorder %s21, 1
      %s406 = scalar_select %p405, %s21, 1
      %p407 = scmp.lt.s32.totalorder %s404, 15
      %s408 = scalar_select %p407, %s404, 15
      %s409 = smul.addr %s408, 2
      %s410 = smul.addr %s406, 32
      %s411 = sadd.s32 %s409, %s410
      %s412 = smul.addr %s411, 4
      %s413 = scalar_lea.vmem %s2, %s412
      %s414 = sadd.s32 %s22, 1
      %s415 = smul.u32 %s414, 8
      %p416 = scmp.lt.s32.totalorder %s415, 15
      %s417 = scalar_select %p416, %s415, 15
      %p418 = scmp.lt.s32.totalorder %s23, 0
      %s419 = scalar_select %p418, %s23, 0
      %s420 = smul.addr %s419, 4
      %s421 = scalar_lea.vmem %s3, %s420
      %p422 = scmp.lt.s32.totalorder %s23, 0
      %s423 = scalar_select %p422, %s23, 0
      %s424 = scalar_lea.vmem %s4, %s423
      %s425 = smul.u32 8, %s22
      %p426 = scmp.lt.s32.totalorder %s21, 1
      %s427 = scalar_select %p426, %s21, 1
      %p428 = scmp.lt.s32.totalorder %s425, 15
      %s429 = scalar_select %p428, %s425, 15
      %p430 = scmp.lt.s32.totalorder %s23, 0
      %s431 = scalar_select %p430, %s23, 0
      %s432 = smul.addr %s429, 2
      %s433 = sadd.s32 %s431, %s432
      %s434 = smul.addr %s427, 32
      %s435 = sadd.s32 %s433, %s434
      %s436 = smul.addr %s435, 4
      %s437 = scalar_lea.vmem %s5, %s436
      %s438 = smul.u32 8, %s22
      %v440 = vld [vmem:[%s382] sm:$0xf]
      %v441 = vld [vmem:[%s382 + $0x4] sm:$0xf]
      %v442 = vld [vmem:[%s382 + $0x8] sm:$0xf]
      %v443 = vld [vmem:[%s382 + $0xc] sm:$0xf]
      %v444 = vld [vmem:[%s382 + $0x10] sm:$0xf]
      %v445 = vld [vmem:[%s382 + $0x14] sm:$0xf]
      %v446 = vld [vmem:[%s382 + $0x18] sm:$0xf]
      %v447 = vld [vmem:[%s382 + $0x1c] sm:$0xf]
      %v448 = vld [vmem:[%s382 + $0x20] sm:$0xf]
      %v449 = vld [vmem:[%s382 + $0x24] sm:$0xf]
      %v450 = vld [vmem:[%s382 + $0x28] sm:$0xf]
      %v451 = vld [vmem:[%s382 + $0x2c] sm:$0xf]
      %v452 = vld [vmem:[%s382 + $0x30] sm:$0xf]
      %v453 = vld [vmem:[%s382 + $0x34] sm:$0xf]
      %v454 = vld [vmem:[%s382 + $0x38] sm:$0xf]
      %v455 = vld [vmem:[%s382 + $0x3c] sm:$0xf]
      %p456 = scmp.gt.s32.totalorder %s22, 0
      %v457 = vld [vmem:[%s396] sm:$0xf]
      %v458 = vld [vmem:[%s396 + $0x4] sm:$0xf]
      %s459 = scalar_select %p456, 1, 0
      %v460 = vstv %s459
      %vm461 = vcmp.eq.s32.totalorder %v460, 1
      %v462 = vsel %vm461, %v457, 0
      %v463 = vsel %vm461, %v458, 0
      %p464 = scmp.lt.s32.totalorder %s22, 1
      %v465 = vld [vmem:[%s413] sm:$0xf]
      %v466 = vld [vmem:[%s413 + $0x4] sm:$0xf]
      %s467 = scalar_select %p464, 1, 0
      %v468 = vstv %s467
      %vm469 = vcmp.eq.s32.totalorder %v468, 1
      %v470 = vsel %vm469, %v465, 0
      %v471 = vsel %vm469, %v466, 0
      %v472 = vunpack.c.l.bf16 %v462
      %v473 = vunpack.c.l.bf16 %v463
      %v474 = vunpack.c.l.bf16 %v440
      %v475 = vunpack.c.l.bf16 %v441
      %v476 = vunpack.c.l.bf16 %v442
      %v477 = vunpack.c.l.bf16 %v443
      %v478 = vunpack.c.l.bf16 %v444
      %v479 = vunpack.c.l.bf16 %v445
      %v480 = vunpack.c.l.bf16 %v446
      %v481 = vunpack.c.l.bf16 %v447
      %v482 = vunpack.c.l.bf16 %v448
      %v483 = vunpack.c.l.bf16 %v449
      %v484 = vunpack.c.l.bf16 %v450
      %v485 = vunpack.c.l.bf16 %v451
      %v486 = vunpack.c.l.bf16 %v452
      %v487 = vunpack.c.l.bf16 %v453
      %v488 = vunpack.c.l.bf16 %v454
      %v489 = vunpack.c.l.bf16 %v455
      %v490 = vunpack.c.l.bf16 %v470
      %v491 = vunpack.c.l.bf16 %v471
      %v492 = vlaneseq
      %v493 = vshrl.u32 %v492, 7
      %v494 = vadd.s32 %v493, 8
      %vm495 = vcmp.gt.s32.totalorder %v493, 0
      %vm496 = vcmp.gt.s32.totalorder %v494, 0
      %v497 = vrot.slane %v472, 7
      %v498 = vrot.slane %v474, 7
      %v499 = vrot.slane %v476, 7
      %v500 = vrot.slane %v478, 7
      %v501 = vrot.slane %v480, 7
      %v502 = vrot.slane %v482, 7
      %v503 = vrot.slane %v484, 7
      %v504 = vrot.slane %v486, 7
      %v505 = vrot.slane %v488, 7
      %v506 = vrot.slane %v490, 7
      %v507 = vrot.slane %v473, 7
      %v508 = vrot.slane %v475, 7
      %v509 = vrot.slane %v477, 7
      %v510 = vrot.slane %v479, 7
      %v511 = vrot.slane %v481, 7
      %v512 = vrot.slane %v483, 7
      %v513 = vrot.slane %v485, 7
      %v514 = vrot.slane %v487, 7
      %v515 = vrot.slane %v489, 7
      %v516 = vrot.slane %v491, 7
      %vm517 = vcmp.lt.s32.totalorder %v493, 1
      %v518 = vsel %vm517, %v497, %v507
      %v519 = vsel %vm517, %v498, %v508
      %v520 = vsel %vm517, %v499, %v509
      %v521 = vsel %vm517, %v500, %v510
      %v522 = vsel %vm517, %v501, %v511
      %v523 = vsel %vm517, %v502, %v512
      %v524 = vsel %vm517, %v503, %v513
      %v525 = vsel %vm517, %v504, %v514
      %v526 = vsel %vm517, %v505, %v515
      %v527 = vsel %vm517, %v506, %v516
      %v528 = vsel %vm517, %v507, %v497
      %v529 = vsel %vm517, %v508, %v498
      %v530 = vsel %vm517, %v509, %v499
      %v531 = vsel %vm517, %v510, %v500
      %v532 = vsel %vm517, %v511, %v501
      %v533 = vsel %vm517, %v512, %v502
      %v534 = vsel %vm517, %v513, %v503
      %v535 = vsel %vm517, %v514, %v504
      %v536 = vsel %vm517, %v515, %v505
      %v537 = vsel %vm517, %v516, %v506
      %v538 = vsel %vm495, 1, 0
      %v539 = vsel %vm496, 1, 0
      %vm540 = vcmp.eq.s32.totalorder %v538, 1
      %vm541 = vcmp.eq.s32.totalorder %v539, 1
      %v542 = vsel %vm540, %v528, 0.0
      %v543 = vsel %vm541, %v518, 0.0
      %v544 = vsel %vm540, %v529, 0.0
      %v545 = vsel %vm541, %v519, 0.0
      %v546 = vsel %vm540, %v530, 0.0
      %v547 = vsel %vm541, %v520, 0.0
      %v548 = vsel %vm540, %v531, 0.0
      %v549 = vsel %vm541, %v521, 0.0
      %v550 = vsel %vm540, %v532, 0.0
      %v551 = vsel %vm541, %v522, 0.0
      %v552 = vsel %vm540, %v533, 0.0
      %v553 = vsel %vm541, %v523, 0.0
      %v554 = vsel %vm540, %v534, 0.0
      %v555 = vsel %vm541, %v524, 0.0
      %v556 = vsel %vm540, %v535, 0.0
      %v557 = vsel %vm541, %v525, 0.0
      %v558 = vsel %vm540, %v536, 0.0
      %v559 = vsel %vm541, %v526, 0.0
      %v560 = vsel %vm540, %v537, 0.0
      %v561 = vsel %vm541, %v527, 0.0
      %v562 = vpack.c.bf16 %v543, %v542
      %v563 = vpack.c.bf16 %v545, %v544
      %v564 = vpack.c.bf16 %v547, %v546
      %v565 = vpack.c.bf16 %v549, %v548
      %v566 = vpack.c.bf16 %v551, %v550
      %v567 = vpack.c.bf16 %v553, %v552
      %v568 = vpack.c.bf16 %v555, %v554
      %v569 = vpack.c.bf16 %v557, %v556
      %v570 = vpack.c.bf16 %v559, %v558
      %v571 = vpack.c.bf16 %v561, %v560
      %vm572 = vcmp.lt.s32.totalorder %v493, 15
      %vm573 = vcmp.lt.s32.totalorder %v494, 15
      %v574 = vrot.slane %v472, 1
      %v575 = vrot.slane %v474, 1
      %v576 = vrot.slane %v476, 1
      %v577 = vrot.slane %v478, 1
      %v578 = vrot.slane %v480, 1
      %v579 = vrot.slane %v482, 1
      %v580 = vrot.slane %v484, 1
      %v581 = vrot.slane %v486, 1
      %v582 = vrot.slane %v488, 1
      %v583 = vrot.slane %v490, 1
      %v584 = vrot.slane %v473, 1
      %v585 = vrot.slane %v475, 1
      %v586 = vrot.slane %v477, 1
      %v587 = vrot.slane %v479, 1
      %v588 = vrot.slane %v481, 1
      %v589 = vrot.slane %v483, 1
      %v590 = vrot.slane %v485, 1
      %v591 = vrot.slane %v487, 1
      %v592 = vrot.slane %v489, 1
      %v593 = vrot.slane %v491, 1
      %vm594 = vcmp.lt.s32.totalorder %v493, 7
      %v595 = vsel %vm594, %v574, %v584
      %v596 = vsel %vm594, %v575, %v585
      %v597 = vsel %vm594, %v576, %v586
      %v598 = vsel %vm594, %v577, %v587
      %v599 = vsel %vm594, %v578, %v588
      %v600 = vsel %vm594, %v579, %v589
      %v601 = vsel %vm594, %v580, %v590
      %v602 = vsel %vm594, %v581, %v591
      %v603 = vsel %vm594, %v582, %v592
      %v604 = vsel %vm594, %v583, %v593
      %v605 = vsel %vm594, %v584, %v574
      %v606 = vsel %vm594, %v585, %v575
      %v607 = vsel %vm594, %v586, %v576
      %v608 = vsel %vm594, %v587, %v577
      %v609 = vsel %vm594, %v588, %v578
      %v610 = vsel %vm594, %v589, %v579
      %v611 = vsel %vm594, %v590, %v580
      %v612 = vsel %vm594, %v591, %v581
      %v613 = vsel %vm594, %v592, %v582
      %v614 = vsel %vm594, %v593, %v583
      %v615 = vsel %vm572, 1, 0
      %v616 = vsel %vm573, 1, 0
      %vm617 = vcmp.eq.s32.totalorder %v615, 1
      %vm618 = vcmp.eq.s32.totalorder %v616, 1
      %v619 = vsel %vm617, %v595, 0.0
      %v620 = vsel %vm618, %v605, 0.0
      %v621 = vsel %vm617, %v596, 0.0
      %v622 = vsel %vm618, %v606, 0.0
      %v623 = vsel %vm617, %v597, 0.0
      %v624 = vsel %vm618, %v607, 0.0
      %v625 = vsel %vm617, %v598, 0.0
      %v626 = vsel %vm618, %v608, 0.0
      %v627 = vsel %vm617, %v599, 0.0
      %v628 = vsel %vm618, %v609, 0.0
      %v629 = vsel %vm617, %v600, 0.0
      %v630 = vsel %vm618, %v610, 0.0
      %v631 = vsel %vm617, %v601, 0.0
      %v632 = vsel %vm618, %v611, 0.0
      %v633 = vsel %vm617, %v602, 0.0
      %v634 = vsel %vm618, %v612, 0.0
      %v635 = vsel %vm617, %v603, 0.0
      %v636 = vsel %vm618, %v613, 0.0
      %v637 = vsel %vm617, %v604, 0.0
      %v638 = vsel %vm618, %v614, 0.0
      %v639 = vpack.c.bf16 %v620, %v619
      %v640 = vpack.c.bf16 %v622, %v621
      %v641 = vpack.c.bf16 %v624, %v623
      %v642 = vpack.c.bf16 %v626, %v625
      %v643 = vpack.c.bf16 %v628, %v627
      %v644 = vpack.c.bf16 %v630, %v629
      %v645 = vpack.c.bf16 %v632, %v631
      %v646 = vpack.c.bf16 %v634, %v633
      %v647 = vpack.c.bf16 %v636, %v635
      %v648 = vpack.c.bf16 %v638, %v637
      %v669 = vunpack.c.l.b16 %v462
      %v670 = vunpack.c.l.b16 %v463
      %v671 = vunpack.c.l.b16 %v440
      %v672 = vunpack.c.l.b16 %v441
      %v673 = vunpack.c.l.b16 %v442
      %v674 = vunpack.c.l.b16 %v443
      %v675 = vunpack.c.l.b16 %v444
      %v676 = vunpack.c.l.b16 %v445
      %v677 = vunpack.c.l.b16 %v446
      %v678 = vunpack.c.l.b16 %v447
      %v679 = vunpack.c.l.b16 %v448
      %v680 = vunpack.c.l.b16 %v449
      %v681 = vunpack.c.l.b16 %v450
      %v682 = vunpack.c.l.b16 %v451
      %v683 = vunpack.c.l.b16 %v452
      %v684 = vunpack.c.l.b16 %v453
      %v685 = vunpack.c.l.b16 %v454
      %v686 = vunpack.c.l.b16 %v455
      %v687 = vunpack.c.l.b16 %v470
      %v688 = vunpack.c.l.b16 %v471
      %v689 = vpack.c.b16 %v670, %v669
      %v690 = vpack.c.b16 %v672, %v671
      %v691 = vpack.c.b16 %v674, %v673
      %v692 = vpack.c.b16 %v676, %v675
      %v693 = vpack.c.b16 %v678, %v677
      %v694 = vpack.c.b16 %v680, %v679
      %v695 = vpack.c.b16 %v682, %v681
      %v696 = vpack.c.b16 %v684, %v683
      %v697 = vpack.c.b16 %v686, %v685
      %v698 = vpack.c.b16 %v688, %v687
      %699 = vrot.lane.b32.xlu0 %v689, 4
      %v700 = vpop.permute.xlu0 %699
      %701 = vrot.lane.b32.xlu0 %v690, 4
      %v702 = vpop.permute.xlu0 %701
      %703 = vrot.lane.b32.xlu0 %v691, 4
      %v704 = vpop.permute.xlu0 %703
      %705 = vrot.lane.b32.xlu0 %v692, 4
      %v706 = vpop.permute.xlu0 %705
      %707 = vrot.lane.b32.xlu0 %v693, 4
      %v708 = vpop.permute.xlu0 %707
      %709 = vrot.lane.b32.xlu0 %v694, 4
      %v710 = vpop.permute.xlu0 %709
      %711 = vrot.lane.b32.xlu0 %v695, 4
      %v712 = vpop.permute.xlu0 %711
      %713 = vrot.lane.b32.xlu0 %v696, 4
      %v714 = vpop.permute.xlu0 %713
      %715 = vrot.lane.b32.xlu0 %v697, 4
      %v716 = vpop.permute.xlu0 %715
      %717 = vrot.lane.b32.xlu0 %v698, 4
      %v718 = vpop.permute.xlu0 %717
      %729 = vrot.lane.b32.xlu0 %v639, 8
      %v730 = vpop.permute.xlu0 %729
      %731 = vrot.lane.b32.xlu0 %v640, 8
      %v732 = vpop.permute.xlu0 %731
      %733 = vrot.lane.b32.xlu0 %v641, 8
      %v734 = vpop.permute.xlu0 %733
      %735 = vrot.lane.b32.xlu0 %v642, 8
      %v736 = vpop.permute.xlu0 %735
      %737 = vrot.lane.b32.xlu0 %v643, 8
      %v738 = vpop.permute.xlu0 %737
      %739 = vrot.lane.b32.xlu0 %v644, 8
      %v740 = vpop.permute.xlu0 %739
      %741 = vrot.lane.b32.xlu0 %v645, 8
      %v742 = vpop.permute.xlu0 %741
      %743 = vrot.lane.b32.xlu0 %v646, 8
      %v744 = vpop.permute.xlu0 %743
      %745 = vrot.lane.b32.xlu0 %v647, 8
      %v746 = vpop.permute.xlu0 %745
      %747 = vrot.lane.b32.xlu0 %v648, 8
      %v748 = vpop.permute.xlu0 %747
      %vm749 = vcmask 31744
      %v752 = vsel %vm749, %v562, %v700
      %v755 = vsel %vm749, %v563, %v702
      %v758 = vsel %vm749, %v564, %v704
      %v761 = vsel %vm749, %v565, %v706
      %v764 = vsel %vm749, %v566, %v708
      %v767 = vsel %vm749, %v567, %v710
      %v770 = vsel %vm749, %v568, %v712
      %v773 = vsel %vm749, %v569, %v714
      %v776 = vsel %vm749, %v570, %v716
      %v779 = vsel %vm749, %v571, %v718
      %vm780 = vcmask 64512
      %v782 = vsel %vm780, %v752, %v730
      %v784 = vsel %vm780, %v755, %v732
      %v786 = vsel %vm780, %v758, %v734
      %v788 = vsel %vm780, %v761, %v736
      %v790 = vsel %vm780, %v764, %v738
      %v792 = vsel %vm780, %v767, %v740
      %v794 = vsel %vm780, %v770, %v742
      %v796 = vsel %vm780, %v773, %v744
      %v798 = vsel %vm780, %v776, %v746
      %v800 = vsel %vm780, %v779, %v748
      %v801 = vld [vmem:[%s421] sm:$0xf]
      %v802 = vld [vmem:[%s421 + $0x4] sm:$0x3]
      %s803 = scalar_lea.vmem %s421, 8
      %v804 = vld [vmem:[%s803] sm:$0xf]
      %v805 = vld [vmem:[%s803 + $0x4] sm:$0x3]
      %v808 = vunpack.c.l.b16 %v804
      %v809 = vunpack.c.l.b16 %v805
      %v810 = vpack.c.b16 %v809, %v808
      %vm811 = vcmask 97280
      %v812 = vsel %vm811, %v784, 0
      %v814 = vsel %vm811, %v786, 0
      %v816 = vsel %vm811, %v788, 0
      %v818 = vsel %vm811, %v790, 0
      %v820 = vsel %vm811, %v792, 0
      %v822 = vsel %vm811, %v794, 0
      %v824 = vsel %vm811, %v796, 0
      %v826 = vsel %vm811, %v798, 0
      %vm828 = vcmask 1045504
      %v830 = vsel %vm828, %v810, 0
      %832 = vmatprep.subr.bf16.mxu0 0
      %833 = vmatpush1.bf16.msra.mxu0 %v830
      %834 = vmatprep.subr.bf16.mxu0 0
      %835 = vmatpush1.bf16.msra.mxu0 0
      %836 = vmatprep.subr.bf16.mxu0 0
      %837 = vmatpush1.bf16.msra.mxu0 0
      %838 = vmatprep.subr.bf16.mxu0 0
      %839 = vmatpush1.bf16.msra.mxu0 0
      %840 = vmatprep.subr.bf16.mxu0 0
      %841 = vmatpush1.bf16.msra.mxu0 0
      %842 = vmatprep.subr.bf16.mxu0 0
      %843 = vmatpush1.bf16.msra.mxu0 0
      %844 = vmatprep.subr.bf16.mxu0 0
      %845 = vmatpush1.bf16.msra.mxu0 0
      %846 = vmatprep.subr.bf16.mxu0 0
      %847 = vmatpush1.bf16.msra.mxu0 0
      %848 = vmatprep.subr.bf16.mxu0 0
      %849 = vmatpush1.bf16.msra.mxu0 0
      %850 = vmatprep.subr.bf16.mxu0 0
      %851 = vmatpush1.bf16.msra.mxu0 0
      %852 = vmatprep.subr.bf16.mxu0 0
      %853 = vmatpush1.bf16.msra.mxu0 0
      %854 = vmatprep.subr.bf16.mxu0 0
      %855 = vmatpush1.bf16.msra.mxu0 0
      %856 = vmatprep.subr.bf16.mxu0 0
      %857 = vmatpush1.bf16.msra.mxu0 0
      %858 = vmatprep.subr.bf16.mxu0 0
      %859 = vmatpush1.bf16.msra.mxu0 0
      %860 = vmatprep.subr.bf16.mxu0 0
      %861 = vmatpush1.bf16.msra.mxu0 0
      %862 = vmatprep.subr.bf16.mxu0 0
      %863 = vmatpush1.bf16.msra.mxu0 0
      %864 = vmatprep.mubr.bf16.mxu0 0
      %865 = vmatmul.mubr.bf16.gmra.mrb[0].mxu0 %v812
      %v866 = vpop.f32.mrb[0].mxu0
      %v867 = vadd.f32 0.0, %v866
      %v868 = vpop.f32.mrb[0].mxu0
      %v869 = vpop.f32.mrb[0].mxu0
      %v870 = vadd.f32 0.0, %v869
      %v871 = vpop.f32.mrb[0].mxu0
      %872 = vmatprep.mubr.bf16.mxu0 0
      %873 = vmatmul.mubr.bf16.gmra.mrb[0].mxu0 %v814
      %v874 = vpop.f32.mrb[0].mxu0
      %v875 = vadd.f32 0.0, %v874
      %v876 = vpop.f32.mrb[0].mxu0
      %v877 = vpop.f32.mrb[0].mxu0
      %v878 = vadd.f32 0.0, %v877
      %v879 = vpop.f32.mrb[0].mxu0
      %880 = vmatprep.mubr.bf16.mxu0 0
      %881 = vmatmul.mubr.bf16.gmra.mrb[0].mxu0 %v816
      %v882 = vpop.f32.mrb[0].mxu0
      %v883 = vadd.f32 0.0, %v882
      %v884 = vpop.f32.mrb[0].mxu0
      %v885 = vpop.f32.mrb[0].mxu0
      %v886 = vadd.f32 0.0, %v885
      %v887 = vpop.f32.mrb[0].mxu0
      %888 = vmatprep.mubr.bf16.mxu0 0
      %889 = vmatmul.mubr.bf16.gmra.mrb[0].mxu0 %v818
      %v890 = vpop.f32.mrb[0].mxu0
      %v891 = vadd.f32 0.0, %v890
      %v892 = vpop.f32.mrb[0].mxu0
      %v893 = vpop.f32.mrb[0].mxu0
      %v894 = vadd.f32 0.0, %v893
      %v895 = vpop.f32.mrb[0].mxu0
      %896 = vmatprep.mubr.bf16.mxu0 0
      %897 = vmatmul.mubr.bf16.gmra.mrb[0].mxu0 %v820
      %v898 = vpop.f32.mrb[0].mxu0
      %v899 = vadd.f32 0.0, %v898
      %v900 = vpop.f32.mrb[0].mxu0
      %v901 = vpop.f32.mrb[0].mxu0
      %v902 = vadd.f32 0.0, %v901
      %v903 = vpop.f32.mrb[0].mxu0
      %904 = vmatprep.mubr.bf16.mxu0 0
      %905 = vmatmul.mubr.bf16.gmra.mrb[0].mxu0 %v822
      %v906 = vpop.f32.mrb[0].mxu0
      %v907 = vadd.f32 0.0, %v906
      %v908 = vpop.f32.mrb[0].mxu0
      %v909 = vpop.f32.mrb[0].mxu0
      %v910 = vadd.f32 0.0, %v909
      %v911 = vpop.f32.mrb[0].mxu0
      %912 = vmatprep.mubr.bf16.mxu0 0
      %913 = vmatmul.mubr.bf16.gmra.mrb[0].mxu0 %v824
      %v914 = vpop.f32.mrb[0].mxu0
      %v915 = vadd.f32 0.0, %v914
      %v916 = vpop.f32.mrb[0].mxu0
      %v917 = vpop.f32.mrb[0].mxu0
      %v918 = vadd.f32 0.0, %v917
      %v919 = vpop.f32.mrb[0].mxu0
      %920 = vmatprep.mubr.bf16.mxu0 0
      %921 = vmatmul.mubr.bf16.gmra.mrb[0].mxu0 %v826
      %v922 = vpop.f32.mrb[0].mxu0
      %v923 = vadd.f32 0.0, %v922
      %v924 = vpop.f32.mrb[0].mxu0
      %v925 = vpop.f32.mrb[0].mxu0
      %v926 = vadd.f32 0.0, %v925
      %v927 = vpop.f32.mrb[0].mxu0
      %928 = vdwg.mxu0
      %v931 = vunpack.c.l.b16 %v801
      %v932 = vunpack.c.l.b16 %v802
      %v933 = vpack.c.b16 %v932, %v931
      %v934 = vsel %vm811, %v782, 0
      %v937 = vsel %vm828, %v933, 0
      %939 = vmatprep.subr.bf16.mxu0 0
      %940 = vmatpush1.bf16.msra.mxu0 %v937
      %941 = vmatprep.subr.bf16.mxu0 0
      %942 = vmatpush1.bf16.msra.mxu0 0
      %943 = vmatprep.subr.bf16.mxu0 0
      %944 = vmatpush1.bf16.msra.mxu0 0
      %945 = vmatprep.subr.bf16.mxu0 0
      %946 = vmatpush1.bf16.msra.mxu0 0
      %947 = vmatprep.subr.bf16.mxu0 0
      %948 = vmatpush1.bf16.msra.mxu0 0
      %949 = vmatprep.subr.bf16.mxu0 0
      %950 = vmatpush1.bf16.msra.mxu0 0
      %951 = vmatprep.subr.bf16.mxu0 0
      %952 = vmatpush1.bf16.msra.mxu0 0
      %953 = vmatprep.subr.bf16.mxu0 0
      %954 = vmatpush1.bf16.msra.mxu0 0
      %955 = vmatprep.subr.bf16.mxu0 0
      %956 = vmatpush1.bf16.msra.mxu0 0
      %957 = vmatprep.subr.bf16.mxu0 0
      %958 = vmatpush1.bf16.msra.mxu0 0
      %959 = vmatprep.subr.bf16.mxu0 0
      %960 = vmatpush1.bf16.msra.mxu0 0
      %961 = vmatprep.subr.bf16.mxu0 0
      %962 = vmatpush1.bf16.msra.mxu0 0
      %963 = vmatprep.subr.bf16.mxu0 0
      %964 = vmatpush1.bf16.msra.mxu0 0
      %965 = vmatprep.subr.bf16.mxu0 0
      %966 = vmatpush1.bf16.msra.mxu0 0
      %967 = vmatprep.subr.bf16.mxu0 0
      %968 = vmatpush1.bf16.msra.mxu0 0
      %969 = vmatprep.subr.bf16.mxu0 0
      %970 = vmatpush1.bf16.msra.mxu0 0
      %971 = vmatprep.mubr.bf16.mxu0 0
      %972 = vmatmul.mubr.bf16.gmra.mrb[0].mxu0 %v934
      %v973 = vpop.f32.mrb[0].mxu0
      %v974 = vadd.f32 %v867, %v973
      %v975 = vpop.f32.mrb[0].mxu0
      %v976 = vpop.f32.mrb[0].mxu0
      %v977 = vadd.f32 %v870, %v976
      %v978 = vpop.f32.mrb[0].mxu0
      %979 = vmatprep.mubr.bf16.mxu0 0
      %980 = vmatmul.mubr.bf16.gmra.mrb[0].mxu0 %v812
      %v981 = vpop.f32.mrb[0].mxu0
      %v982 = vadd.f32 %v875, %v981
      %v983 = vpop.f32.mrb[0].mxu0
      %v984 = vpop.f32.mrb[0].mxu0
      %v985 = vadd.f32 %v878, %v984
      %v986 = vpop.f32.mrb[0].mxu0
      %987 = vmatprep.mubr.bf16.mxu0 0
      %988 = vmatmul.mubr.bf16.gmra.mrb[0].mxu0 %v814
      %v989 = vpop.f32.mrb[0].mxu0
      %v990 = vadd.f32 %v883, %v989
      %v991 = vpop.f32.mrb[0].mxu0
      %v992 = vpop.f32.mrb[0].mxu0
      %v993 = vadd.f32 %v886, %v992
      %v994 = vpop.f32.mrb[0].mxu0
      %995 = vmatprep.mubr.bf16.mxu0 0
      %996 = vmatmul.mubr.bf16.gmra.mrb[0].mxu0 %v816
      %v997 = vpop.f32.mrb[0].mxu0
      %v998 = vadd.f32 %v891, %v997
      %v999 = vpop.f32.mrb[0].mxu0
      %v1000 = vpop.f32.mrb[0].mxu0
      %v1001 = vadd.f32 %v894, %v1000
      %v1002 = vpop.f32.mrb[0].mxu0
      %1003 = vmatprep.mubr.bf16.mxu0 0
      %1004 = vmatmul.mubr.bf16.gmra.mrb[0].mxu0 %v818
      %v1005 = vpop.f32.mrb[0].mxu0
      %v1006 = vadd.f32 %v899, %v1005
      %v1007 = vpop.f32.mrb[0].mxu0
      %v1008 = vpop.f32.mrb[0].mxu0
      %v1009 = vadd.f32 %v902, %v1008
      %v1010 = vpop.f32.mrb[0].mxu0
      %1011 = vmatprep.mubr.bf16.mxu0 0
      %1012 = vmatmul.mubr.bf16.gmra.mrb[0].mxu0 %v820
      %v1013 = vpop.f32.mrb[0].mxu0
      %v1014 = vadd.f32 %v907, %v1013
      %v1015 = vpop.f32.mrb[0].mxu0
      %v1016 = vpop.f32.mrb[0].mxu0
      %v1017 = vadd.f32 %v910, %v1016
      %v1018 = vpop.f32.mrb[0].mxu0
      %1019 = vmatprep.mubr.bf16.mxu0 0
      %1020 = vmatmul.mubr.bf16.gmra.mrb[0].mxu0 %v822
      %v1021 = vpop.f32.mrb[0].mxu0
      %v1022 = vadd.f32 %v915, %v1021
      %v1023 = vpop.f32.mrb[0].mxu0
      %v1024 = vpop.f32.mrb[0].mxu0
      %v1025 = vadd.f32 %v918, %v1024
      %v1026 = vpop.f32.mrb[0].mxu0
      %1027 = vmatprep.mubr.bf16.mxu0 0
      %1028 = vmatmul.mubr.bf16.gmra.mrb[0].mxu0 %v824
      %v1029 = vpop.f32.mrb[0].mxu0
      %v1030 = vadd.f32 %v923, %v1029
      %v1031 = vpop.f32.mrb[0].mxu0
      %v1032 = vpop.f32.mrb[0].mxu0
      %v1033 = vadd.f32 %v926, %v1032
      %v1034 = vpop.f32.mrb[0].mxu0
      %1035 = vdwg.mxu0
      %s1036 = scalar_lea.vmem %s421, 16
      %v1037 = vld [vmem:[%s1036] sm:$0xf]
      %v1038 = vld [vmem:[%s1036 + $0x4] sm:$0x3]
      %v1041 = vunpack.c.l.b16 %v1037
      %v1042 = vunpack.c.l.b16 %v1038
      %v1043 = vpack.c.b16 %v1042, %v1041
      %v1044 = vsel %vm811, %v800, 0
      %v1047 = vsel %vm828, %v1043, 0
      %1049 = vmatprep.subr.bf16.mxu0 0
      %1050 = vmatpush1.bf16.msra.mxu0 %v1047
      %1051 = vmatprep.subr.bf16.mxu0 0
      %1052 = vmatpush1.bf16.msra.mxu0 0
      %1053 = vmatprep.subr.bf16.mxu0 0
      %1054 = vmatpush1.bf16.msra.mxu0 0
      %1055 = vmatprep.subr.bf16.mxu0 0
      %1056 = vmatpush1.bf16.msra.mxu0 0
      %1057 = vmatprep.subr.bf16.mxu0 0
      %1058 = vmatpush1.bf16.msra.mxu0 0
      %1059 = vmatprep.subr.bf16.mxu0 0
      %1060 = vmatpush1.bf16.msra.mxu0 0
      %1061 = vmatprep.subr.bf16.mxu0 0
      %1062 = vmatpush1.bf16.msra.mxu0 0
      %1063 = vmatprep.subr.bf16.mxu0 0
      %1064 = vmatpush1.bf16.msra.mxu0 0
      %1065 = vmatprep.subr.bf16.mxu0 0
      %1066 = vmatpush1.bf16.msra.mxu0 0
      %1067 = vmatprep.subr.bf16.mxu0 0
      %1068 = vmatpush1.bf16.msra.mxu0 0
      %1069 = vmatprep.subr.bf16.mxu0 0
      %1070 = vmatpush1.bf16.msra.mxu0 0
      %1071 = vmatprep.subr.bf16.mxu0 0
      %1072 = vmatpush1.bf16.msra.mxu0 0
      %1073 = vmatprep.subr.bf16.mxu0 0
      %1074 = vmatpush1.bf16.msra.mxu0 0
      %1075 = vmatprep.subr.bf16.mxu0 0
      %1076 = vmatpush1.bf16.msra.mxu0 0
      %1077 = vmatprep.subr.bf16.mxu0 0
      %1078 = vmatpush1.bf16.msra.mxu0 0
      %1079 = vmatprep.subr.bf16.mxu0 0
      %1080 = vmatpush1.bf16.msra.mxu0 0
      %1081 = vmatprep.mubr.bf16.mxu0 0
      %1082 = vmatmul.mubr.bf16.gmra.mrb[0].mxu0 %v814
      %v1083 = vpop.f32.mrb[0].mxu0
      %v1084 = vadd.f32 0.0, %v1083
      %v1085 = vpop.f32.mrb[0].mxu0
      %v1086 = vpop.f32.mrb[0].mxu0
      %v1087 = vadd.f32 0.0, %v1086
      %v1088 = vpop.f32.mrb[0].mxu0
      %1089 = vmatprep.mubr.bf16.mxu0 0
      %1090 = vmatmul.mubr.bf16.gmra.mrb[0].mxu0 %v816
      %v1091 = vpop.f32.mrb[0].mxu0
      %v1092 = vadd.f32 0.0, %v1091
      %v1093 = vpop.f32.mrb[0].mxu0
      %v1094 = vpop.f32.mrb[0].mxu0
      %v1095 = vadd.f32 0.0, %v1094
      %v1096 = vpop.f32.mrb[0].mxu0
      %1097 = vmatprep.mubr.bf16.mxu0 0
      %1098 = vmatmul.mubr.bf16.gmra.mrb[0].mxu0 %v818
      %v1099 = vpop.f32.mrb[0].mxu0
      %v1100 = vadd.f32 0.0, %v1099
      %v1101 = vpop.f32.mrb[0].mxu0
      %v1102 = vpop.f32.mrb[0].mxu0
      %v1103 = vadd.f32 0.0, %v1102
      %v1104 = vpop.f32.mrb[0].mxu0
      %1105 = vmatprep.mubr.bf16.mxu0 0
      %1106 = vmatmul.mubr.bf16.gmra.mrb[0].mxu0 %v820
      %v1107 = vpop.f32.mrb[0].mxu0
      %v1108 = vadd.f32 0.0, %v1107
      %v1109 = vpop.f32.mrb[0].mxu0
      %v1110 = vpop.f32.mrb[0].mxu0
      %v1111 = vadd.f32 0.0, %v1110
      %v1112 = vpop.f32.mrb[0].mxu0
      %1113 = vmatprep.mubr.bf16.mxu0 0
      %1114 = vmatmul.mubr.bf16.gmra.mrb[0].mxu0 %v822
      %v1115 = vpop.f32.mrb[0].mxu0
      %v1116 = vadd.f32 0.0, %v1115
      %v1117 = vpop.f32.mrb[0].mxu0
      %v1118 = vpop.f32.mrb[0].mxu0
      %v1119 = vadd.f32 0.0, %v1118
      %v1120 = vpop.f32.mrb[0].mxu0
      %1121 = vmatprep.mubr.bf16.mxu0 0
      %1122 = vmatmul.mubr.bf16.gmra.mrb[0].mxu0 %v824
      %v1123 = vpop.f32.mrb[0].mxu0
      %v1124 = vadd.f32 0.0, %v1123
      %v1125 = vpop.f32.mrb[0].mxu0
      %v1126 = vpop.f32.mrb[0].mxu0
      %v1127 = vadd.f32 0.0, %v1126
      %v1128 = vpop.f32.mrb[0].mxu0
      %1129 = vmatprep.mubr.bf16.mxu0 0
      %1130 = vmatmul.mubr.bf16.gmra.mrb[0].mxu0 %v826
      %v1131 = vpop.f32.mrb[0].mxu0
      %v1132 = vadd.f32 0.0, %v1131
      %v1133 = vpop.f32.mrb[0].mxu0
      %v1134 = vpop.f32.mrb[0].mxu0
      %v1135 = vadd.f32 0.0, %v1134
      %v1136 = vpop.f32.mrb[0].mxu0
      %1137 = vmatprep.mubr.bf16.mxu0 0
      %1138 = vmatmul.mubr.bf16.gmra.mrb[0].mxu0 %v1044
      %v1139 = vpop.f32.mrb[0].mxu0
      %v1140 = vadd.f32 0.0, %v1139
      %v1141 = vpop.f32.mrb[0].mxu0
      %v1142 = vpop.f32.mrb[0].mxu0
      %v1143 = vadd.f32 0.0, %v1142
      %v1144 = vpop.f32.mrb[0].mxu0
      %1145 = vdwg.mxu0
      %v1146 = vadd.f32 %v974, %v1084
      %v1147 = vadd.f32 %v977, %v1087
      %v1148 = vadd.f32 %v982, %v1092
      %v1149 = vadd.f32 %v985, %v1095
      %v1150 = vadd.f32 %v990, %v1100
      %v1151 = vadd.f32 %v993, %v1103
      %v1152 = vadd.f32 %v998, %v1108
      %v1153 = vadd.f32 %v1001, %v1111
      %v1154 = vadd.f32 %v1006, %v1116
      %v1155 = vadd.f32 %v1009, %v1119
      %v1156 = vadd.f32 %v1014, %v1124
      %v1157 = vadd.f32 %v1017, %v1127
      %v1158 = vadd.f32 %v1022, %v1132
      %v1159 = vadd.f32 %v1025, %v1135
      %v1160 = vadd.f32 %v1030, %v1140
      %v1161 = vadd.f32 %v1033, %v1143
      %v1162 = vld [vmem:[%s424] sm:$0x1]
      %v1164 = vlaneseq
      %v1165 = vshrl.u32 %v1164, 7
      %v1166 = vsub.s32 0, %v1165
      %v1167 = vrot.slane %v1162, %v1166
      %v1169 = vadd.f32 %v1146, %v1167
      %v1170 = vadd.f32 %v1147, %v1167
      %v1171 = vadd.f32 %v1148, %v1167
      %v1172 = vadd.f32 %v1149, %v1167
      %v1173 = vadd.f32 %v1150, %v1167
      %v1174 = vadd.f32 %v1151, %v1167
      %v1175 = vadd.f32 %v1152, %v1167
      %v1176 = vadd.f32 %v1153, %v1167
      %v1177 = vadd.f32 %v1154, %v1167
      %v1178 = vadd.f32 %v1155, %v1167
      %v1179 = vadd.f32 %v1156, %v1167
      %v1180 = vadd.f32 %v1157, %v1167
      %v1181 = vadd.f32 %v1158, %v1167
      %v1182 = vadd.f32 %v1159, %v1167
      %v1183 = vadd.f32 %v1160, %v1167
      %v1184 = vadd.f32 %v1161, %v1167
      %v1185 = vxor.u32 %v1169, 2147483648
      %v1186 = vxor.u32 %v1170, 2147483648
      %v1187 = vxor.u32 %v1171, 2147483648
      %v1188 = vxor.u32 %v1172, 2147483648
      %v1189 = vxor.u32 %v1173, 2147483648
      %v1190 = vxor.u32 %v1174, 2147483648
      %v1191 = vxor.u32 %v1175, 2147483648
      %v1192 = vxor.u32 %v1176, 2147483648
      %v1193 = vxor.u32 %v1177, 2147483648
      %v1194 = vxor.u32 %v1178, 2147483648
      %v1195 = vxor.u32 %v1179, 2147483648
      %v1196 = vxor.u32 %v1180, 2147483648
      %v1197 = vxor.u32 %v1181, 2147483648
      %v1198 = vxor.u32 %v1182, 2147483648
      %v1199 = vxor.u32 %v1183, 2147483648
      %v1200 = vxor.u32 %v1184, 2147483648
      %v1201 = vmul.f32 %v1185, 1.442695
      %v1202 = vpow.pop %v1201
      %v1203 = vmul.f32 %v1186, 1.442695
      %v1204 = vpow.pop %v1203
      %v1205 = vmul.f32 %v1187, 1.442695
      %v1206 = vpow.pop %v1205
      %v1207 = vmul.f32 %v1188, 1.442695
      %v1208 = vpow.pop %v1207
      %v1209 = vmul.f32 %v1189, 1.442695
      %v1210 = vpow.pop %v1209
      %v1211 = vmul.f32 %v1190, 1.442695
      %v1212 = vpow.pop %v1211
      %v1213 = vmul.f32 %v1191, 1.442695
      %v1214 = vpow.pop %v1213
      %v1215 = vmul.f32 %v1192, 1.442695
      %v1216 = vpow.pop %v1215
      %v1217 = vmul.f32 %v1193, 1.442695
      %v1218 = vpow.pop %v1217
      %v1219 = vmul.f32 %v1194, 1.442695
      %v1220 = vpow.pop %v1219
      %v1221 = vmul.f32 %v1195, 1.442695
      %v1222 = vpow.pop %v1221
      %v1223 = vmul.f32 %v1196, 1.442695
      %v1224 = vpow.pop %v1223
      %v1225 = vmul.f32 %v1197, 1.442695
      %v1226 = vpow.pop %v1225
      %v1227 = vmul.f32 %v1198, 1.442695
      %v1228 = vpow.pop %v1227
      %v1229 = vmul.f32 %v1199, 1.442695
      %v1230 = vpow.pop %v1229
      %v1231 = vmul.f32 %v1200, 1.442695
      %v1232 = vpow.pop %v1231
      %v1233 = vadd.f32 %v1202, 1.0
      %v1234 = vadd.f32 %v1204, 1.0
      %v1235 = vadd.f32 %v1206, 1.0
      %v1236 = vadd.f32 %v1208, 1.0
      %v1237 = vadd.f32 %v1210, 1.0
      %v1238 = vadd.f32 %v1212, 1.0
      %v1239 = vadd.f32 %v1214, 1.0
      %v1240 = vadd.f32 %v1216, 1.0
      %v1241 = vadd.f32 %v1218, 1.0
      %v1242 = vadd.f32 %v1220, 1.0
      %v1243 = vadd.f32 %v1222, 1.0
      %v1244 = vadd.f32 %v1224, 1.0
      %v1245 = vadd.f32 %v1226, 1.0
      %v1246 = vadd.f32 %v1228, 1.0
      %v1247 = vadd.f32 %v1230, 1.0
      %v1248 = vadd.f32 %v1232, 1.0
      %v1249 = vrcp.pop %v1233
      %v1250 = vmul.f32 1.0, %v1249
      %v1251 = vrcp.pop %v1234
      %v1252 = vmul.f32 1.0, %v1251
      %v1253 = vrcp.pop %v1235
      %v1254 = vmul.f32 1.0, %v1253
      %v1255 = vrcp.pop %v1236
      %v1256 = vmul.f32 1.0, %v1255
      %v1257 = vrcp.pop %v1237
      %v1258 = vmul.f32 1.0, %v1257
      %v1259 = vrcp.pop %v1238
      %v1260 = vmul.f32 1.0, %v1259
      %v1261 = vrcp.pop %v1239
      %v1262 = vmul.f32 1.0, %v1261
      %v1263 = vrcp.pop %v1240
      %v1264 = vmul.f32 1.0, %v1263
      %v1265 = vrcp.pop %v1241
      %v1266 = vmul.f32 1.0, %v1265
      %v1267 = vrcp.pop %v1242
      %v1268 = vmul.f32 1.0, %v1267
      %v1269 = vrcp.pop %v1243
      %v1270 = vmul.f32 1.0, %v1269
      %v1271 = vrcp.pop %v1244
      %v1272 = vmul.f32 1.0, %v1271
      %v1273 = vrcp.pop %v1245
      %v1274 = vmul.f32 1.0, %v1273
      %v1275 = vrcp.pop %v1246
      %v1276 = vmul.f32 1.0, %v1275
      %v1277 = vrcp.pop %v1247
      %v1278 = vmul.f32 1.0, %v1277
      %v1279 = vrcp.pop %v1248
      %v1280 = vmul.f32 1.0, %v1279
      %v1281 = vmul.f32 %v1169, %v1250
      %v1282 = vmul.f32 %v1170, %v1252
      %v1283 = vmul.f32 %v1171, %v1254
      %v1284 = vmul.f32 %v1172, %v1256
      %v1285 = vmul.f32 %v1173, %v1258
      %v1286 = vmul.f32 %v1174, %v1260
      %v1287 = vmul.f32 %v1175, %v1262
      %v1288 = vmul.f32 %v1176, %v1264
      %v1289 = vmul.f32 %v1177, %v1266
      %v1290 = vmul.f32 %v1178, %v1268
      %v1291 = vmul.f32 %v1179, %v1270
      %v1292 = vmul.f32 %v1180, %v1272
      %v1293 = vmul.f32 %v1181, %v1274
      %v1294 = vmul.f32 %v1182, %v1276
      %v1295 = vmul.f32 %v1183, %v1278
      %v1296 = vmul.f32 %v1184, %v1280
      %v1297 = vpack.c.bf16 %v1282, %v1281
      %v1298 = vpack.c.bf16 %v1284, %v1283
      %v1299 = vpack.c.bf16 %v1286, %v1285
      %v1300 = vpack.c.bf16 %v1288, %v1287
      %v1301 = vpack.c.bf16 %v1290, %v1289
      %v1302 = vpack.c.bf16 %v1292, %v1291
      %v1303 = vpack.c.bf16 %v1294, %v1293
      %v1304 = vpack.c.bf16 %v1296, %v1295
      %v1313 = vunpack.c.l.b16 %v1297
      %v1314 = vunpack.c.h.b16 %v1297
      %v1315 = vunpack.c.l.b16 %v1298
      %v1316 = vunpack.c.h.b16 %v1298
      %v1317 = vunpack.c.l.b16 %v1299
      %v1318 = vunpack.c.h.b16 %v1299
      %v1319 = vunpack.c.l.b16 %v1300
      %v1320 = vunpack.c.h.b16 %v1300
      %v1321 = vunpack.c.l.b16 %v1301
      %v1322 = vunpack.c.h.b16 %v1301
      %v1323 = vunpack.c.l.b16 %v1302
      %v1324 = vunpack.c.h.b16 %v1302
      %v1325 = vunpack.c.l.b16 %v1303
      %v1326 = vunpack.c.h.b16 %v1303
      %v1327 = vunpack.c.l.b16 %v1304
      %v1328 = vunpack.c.h.b16 %v1304
      %v1329 = vpack.c.b16 %v1313, %v1313
      %v1330 = vpack.c.b16 %v1314, %v1314
      %v1331 = vpack.c.b16 %v1315, %v1315
      %v1332 = vpack.c.b16 %v1316, %v1316
      %v1333 = vpack.c.b16 %v1317, %v1317
      %v1334 = vpack.c.b16 %v1318, %v1318
      %v1335 = vpack.c.b16 %v1319, %v1319
      %v1336 = vpack.c.b16 %v1320, %v1320
      %v1337 = vpack.c.b16 %v1321, %v1321
      %v1338 = vpack.c.b16 %v1322, %v1322
      %v1339 = vpack.c.b16 %v1323, %v1323
      %v1340 = vpack.c.b16 %v1324, %v1324
      %v1341 = vpack.c.b16 %v1325, %v1325
      %v1342 = vpack.c.b16 %v1326, %v1326
      %v1343 = vpack.c.b16 %v1327, %v1327
      %v1344 = vpack.c.b16 %v1328, %v1328
      %vm1361 = vcmask 60416
      %1362 = vst.msk [vmem:[%s437] sm:$0xf] %vm1361, %v1329
      %1363 = vst.msk [vmem:[%s437 + $0x4] sm:$0xf] %vm1361, %v1330
      %1364 = vst.msk [vmem:[%s437 + $0x8] sm:$0xf] %vm1361, %v1331
      %1365 = vst.msk [vmem:[%s437 + $0xc] sm:$0xf] %vm1361, %v1332
      %1366 = vst.msk [vmem:[%s437 + $0x10] sm:$0xf] %vm1361, %v1333
      %1367 = vst.msk [vmem:[%s437 + $0x14] sm:$0xf] %vm1361, %v1334
      %1368 = vst.msk [vmem:[%s437 + $0x18] sm:$0xf] %vm1361, %v1335
      %1369 = vst.msk [vmem:[%s437 + $0x1c] sm:$0xf] %vm1361, %v1336
      %1370 = vst.msk [vmem:[%s437 + $0x20] sm:$0xf] %vm1361, %v1337
      %1371 = vst.msk [vmem:[%s437 + $0x24] sm:$0xf] %vm1361, %v1338
      %1372 = vst.msk [vmem:[%s437 + $0x28] sm:$0xf] %vm1361, %v1339
      %1373 = vst.msk [vmem:[%s437 + $0x2c] sm:$0xf] %vm1361, %v1340
      %1374 = vst.msk [vmem:[%s437 + $0x30] sm:$0xf] %vm1361, %v1341
      %1375 = vst.msk [vmem:[%s437 + $0x34] sm:$0xf] %vm1361, %v1342
      %1376 = vst.msk [vmem:[%s437 + $0x38] sm:$0xf] %vm1361, %v1343
      %1377 = vst.msk [vmem:[%s437 + $0x3c] sm:$0xf] %vm1361, %v1344
      %s1378 = smul.u32 8, %s22
      %p1379 = scmp.lt.s32.totalorder %s21, 1
      %s1380 = scalar_select %p1379, %s21, 1
      %p1381 = scmp.lt.s32.totalorder %s1378, 15
      %s1382 = scalar_select %p1381, %s1378, 15
      %p1383 = scmp.lt.s32.totalorder %s23, 0
      %s1384 = scalar_select %p1383, %s23, 0
      %s1385 = smul.addr %s1382, 2
      %s1386 = sadd.s32 %s1384, %s1385
      %s1387 = smul.addr %s1380, 32
      %s1388 = sadd.s32 %s1386, %s1387
      %s1389 = smul.addr %s1388, 4
      %s1390 = scalar_lea.vmem %s5, %s1389
      // Predicated region
      $region41: #{repconv_forward_nhwc.1} parent=39 // pred_check
        %p1391 = pneg %p209
      $region42: #{repconv_forward_nhwc.1} parent=39 // pred_check_branch
        %1393 = sbr.rel (%p1391) target = $region44
      $region43: #{repconv_forward_nhwc.1} parent=39 // pred_region
        %s1394 = smul.u32 8, %s22
      $region44: #{repconv_forward_nhwc.1} parent=39 // pred_fallthru
        _
    $region40: #{repconv_forward_nhwc.1} parent=5 // pred_fallthru
      _
    %p1395 = scmp.le.s32.totalorder 2, %s11
    // Predicated region
    $region45: #{repconv_forward_nhwc.1} parent=5 // pred_check
      %p1396 = pneg %p1395
    $region46: #{repconv_forward_nhwc.1} parent=5 // pred_check_branch
      %1398 = sbr.rel (%p1396) target = $region48
    $region47: #{repconv_forward_nhwc.1} parent=5 // pred_region
      %s1399 = ssub.s32 %s11, 2
      // Predicated region
      $region49: #{repconv_forward_nhwc.1} parent=47 // pred_check
        %p1400 = pneg %p215
      $region50: #{repconv_forward_nhwc.1} parent=47 // pred_check_branch
        %1402 = sbr.rel (%p1400) target = $region52
      $region51: #{repconv_forward_nhwc.1} parent=47 // pred_region
        %s1403 = smul.u32 8, %s25
        %p1404 = scmp.lt.s32.totalorder %s24, 1
        %s1405 = scalar_select %p1404, %s24, 1
        %p1406 = scmp.lt.s32.totalorder %s1403, 15
        %s1407 = scalar_select %p1406, %s1403, 15
        %p1408 = scmp.lt.s32.totalorder %s26, 0
        %s1409 = scalar_select %p1408, %s26, 0
        %s1410 = smul.addr %s1407, 2
        %s1411 = sadd.s32 %s1409, %s1410
        %s1412 = smul.addr %s1405, 32
        %s1413 = sadd.s32 %s1411, %s1412
        %s1414 = smul.addr %s1413, 4
        %s1415 = scalar_lea.vmem %s5, %s1414
      $region52: #{repconv_forward_nhwc.1} parent=47 // pred_fallthru
        _
    $region48: #{repconv_forward_nhwc.1} parent=5 // pred_fallthru
      _
  $region6: #{repconv_forward_nhwc.1} parent=0 // loop_footer
    %s15 = sadd.s32 1, %s11
  $region7: #{repconv_forward_nhwc.1} parent=0 // loop_footer_branch
    %10 = sbr.rel target = $region3
  $region8: #{repconv_forward_nhwc.1} parent=0 // loop_exit
    _

</llo_original>
